<compile_context>
chip_gen: v6e
topology: v6e:2x2x1
jax: 0.10.0
libtpu: 0.0.40
codegen_flags: <defaults>
</compile_context>

<pallas_src>
import math
import jax
import jax.numpy as jnp
from jax.experimental import pallas as pl
from jax.experimental.pallas import tpu as pltpu

# ---- model hyper-parameters (small, consistent with the module) ----
B = 2        # batch
S = 8        # sequence length
D = 32       # d_model ("size")
H = 4        # attention heads
DK = D // H  # per-head dim
DFF = 64     # feed-forward hidden dim
EPS = 1e-6


def _layer_norm(z, a, b):
    # PyTorch: mean over last dim, UNBIASED std, eps added to std.
    mean = jnp.mean(z, axis=-1, keepdims=True)
    var = jnp.sum((z - mean) ** 2, axis=-1, keepdims=True) / (D - 1)
    std = jnp.sqrt(var)
    return a * (z - mean) / (std + EPS) + b


def encoder_layer_kernel(x_ref, am_ref,
                         wqkv_ref, bqkv_ref, wo_ref, bo_ref,
                         a1_ref, g1_ref, a2_ref, g2_ref,
                         w1_ref, c1_ref, w2_ref, c2_ref,
                         out_ref):
    x = x_ref[...]          # (S, D)   — leading batch dim squeezed by BlockSpec
    add_mask = am_ref[...]  # (1, S)   — additive: 0 keep, -1e9 masked

    # ---- sublayer 0: pre-norm multi-head self-attention ----
    ln1 = _layer_norm(x, a1_ref[...], g1_ref[...])

    # Fused QKV projection: one (S,D) x (D,3D) MXU op instead of three (D,D).
    qkv = jnp.dot(ln1, wqkv_ref[...], preferred_element_type=jnp.float32) + bqkv_ref[...]
    q = qkv[:, 0 * D:1 * D]
    k = qkv[:, 1 * D:2 * D]
    v = qkv[:, 2 * D:3 * D]

    inv_scale = 1.0 / math.sqrt(DK)
    # Heads unrolled (H=4, static).  No last-dim concatenate: each head's
    # context is projected through the matching Wo row-slice and accumulated.
    attn = jnp.zeros((S, D), jnp.float32)
    for h in range(H):
        lo, hi = h * DK, (h + 1) * DK
        qh = q[:, lo:hi]                                   # (S, DK)
        kh = k[:, lo:hi]
        vh = v[:, lo:hi]
        scores = jnp.dot(qh, kh.T, preferred_element_type=jnp.float32) * inv_scale
        scores = scores + add_mask                         # masked keys -> ~-1e9
        p = jax.nn.softmax(scores, axis=-1)
        # TODO(synk): dropout on attention probabilities skipped (eval / p=0)
        ctx_h = jnp.dot(p, vh, preferred_element_type=jnp.float32)       # (S, DK)
        attn = attn + jnp.dot(ctx_h, wo_ref[lo:hi, :],
                              preferred_element_type=jnp.float32)        # (S, D)
    x1 = x + attn + bo_ref[...]                            # residual (+ Wo bias)

    # ---- sublayer 1: pre-norm position-wise feed-forward ----
    ln2 = _layer_norm(x1, a2_ref[...], g2_ref[...])
    hdn = jnp.maximum(
        jnp.dot(ln2, w1_ref[...], preferred_element_type=jnp.float32) + c1_ref[...],
        0.0)
    ff = jnp.dot(hdn, w2_ref[...], preferred_element_type=jnp.float32) + c2_ref[...]

    out_ref[...] = x1 + ff                                 # residual


def encoder_layer(x, mask, params):
    (wq, bq, wk, bk, wv, bv, wo, bo, a1, g1, a2, g2, w1, c1, w2, c2) = params

    # Fuse QKV weights / biases (wrapper-side, once).
    wqkv = jnp.concatenate([wq, wk, wv], axis=1)   # (D, 3D)
    bqkv = jnp.concatenate([bq, bk, bv], axis=1)   # (1, 3D)
    # Additive attention mask: 0.0 where keep, -1e9 where masked.
    add_mask = (mask - 1.0) * 1e9                  # (B, 1, S)

    def full(shape):
        return pl.BlockSpec(shape, lambda b: (0,) * len(shape))

    return pl.pallas_call(
        encoder_layer_kernel,
        out_shape=jax.ShapeDtypeStruct((B, S, D), jnp.float32),
        grid_spec=pltpu.PrefetchScalarGridSpec(
            num_scalar_prefetch=0,
            grid=(B,),
            in_specs=[
                pl.BlockSpec((None, S, D), lambda b: (b, 0, 0)),   # x       -> (S, D)
                pl.BlockSpec((None, 1, S), lambda b: (b, 0, 0)),   # add_mask-> (1, S)
                full((D, 3 * D)), full((1, 3 * D)),                # Wqkv, bqkv
                full((D, D)), full((1, D)),                        # Wo, bo
                full((1, D)), full((1, D)),                        # ln1 a_2, b_2
                full((1, D)), full((1, D)),                        # ln2 a_2, b_2
                full((D, DFF)), full((1, DFF)),                    # FFN W1, b1
                full((DFF, D)), full((1, D)),                      # FFN W2, b2
            ],
            out_specs=pl.BlockSpec((None, S, D), lambda b: (b, 0, 0)),
        ),
        compiler_params=pltpu.CompilerParams(
            dimension_semantics=("parallel",)),
    )(x, add_mask, wqkv, bqkv, wo, bo, a1, g1, a2, g2, w1, c1, w2, c2)


def encoder_layer_ref(x, mask, params):
    """Pure-JAX reference (mirrors the PyTorch module)."""
    (wq, bq, wk, bk, wv, bv, wo, bo, a1, g1, a2, g2, w1, c1, w2, c2) = params

    def ln(z, a, b):
        mean = jnp.mean(z, -1, keepdims=True)
        std = jnp.sqrt(jnp.sum((z - mean) ** 2, -1, keepdims=True) / (D - 1))
        return a * (z - mean) / (std + EPS) + b

    ln1 = ln(x, a1, g1)
    q = ln1 @ wq + bq
    k = ln1 @ wk + bk
    v = ln1 @ wv + bv
    qh = q.reshape(B, S, H, DK).transpose(0, 2, 1, 3)
    kh = k.reshape(B, S, H, DK).transpose(0, 2, 1, 3)
    vh = v.reshape(B, S, H, DK).transpose(0, 2, 1, 3)
    scores = jnp.einsum('bhqd,bhkd->bhqk', qh, kh) / math.sqrt(DK)
    scores = jnp.where(mask[:, None, :, :] == 0.0, -1e9, scores)
    p = jax.nn.softmax(scores, -1)
    ctx = jnp.einsum('bhqk,bhkd->bhqd', p, vh).transpose(0, 2, 1, 3).reshape(B, S, D)
    x1 = x + ctx @ wo + bo
    ln2 = ln(x1, a2, g2)
    ff = jnp.maximum(ln2 @ w1 + c1, 0.0) @ w2 + c2
    return x1 + ff


def init_params(key):
    ks = jax.random.split(key, 8)
    scale = 0.1
    wq = scale * jax.random.normal(ks[0], (D, D), jnp.float32)
    wk = scale * jax.random.normal(ks[1], (D, D), jnp.float32)
    wv = scale * jax.random.normal(ks[2], (D, D), jnp.float32)
    wo = scale * jax.random.normal(ks[3], (D, D), jnp.float32)
    bq = jnp.zeros((1, D), jnp.float32)
    bk = jnp.zeros((1, D), jnp.float32)
    bv = jnp.zeros((1, D), jnp.float32)
    bo = jnp.zeros((1, D), jnp.float32)
    a1 = jnp.ones((1, D), jnp.float32)   # LayerNorm a_2 (init ones)
    g1 = jnp.zeros((1, D), jnp.float32)  # LayerNorm b_2 (init zeros)
    a2 = jnp.ones((1, D), jnp.float32)
    g2 = jnp.zeros((1, D), jnp.float32)
    w1 = scale * jax.random.normal(ks[4], (D, DFF), jnp.float32)
    c1 = 0.01 * jax.random.normal(ks[5], (1, DFF), jnp.float32)
    w2 = scale * jax.random.normal(ks[6], (DFF, D), jnp.float32)
    c2 = 0.01 * jax.random.normal(ks[7], (1, D), jnp.float32)
    return (wq, bq, wk, bk, wv, bv, wo, bo, a1, g1, a2, g2, w1, c1, w2, c2)


if __name__ == "__main__":
    key = jax.random.PRNGKey(0)
    k_x, k_p = jax.random.split(key)

    x = jax.random.normal(k_x, (B, S, D), jnp.float32)
    # mask out the last two key positions of batch element 1
    mask = jnp.ones((B, 1, S), jnp.float32)
    mask = mask.at[1, 0, S - 2:].set(0.0)

    params = init_params(k_p)

    out = encoder_layer(x, mask, params)
    jax.block_until_ready(out)
    assert out.shape == (B, S, D) and out.dtype == jnp.float32

    ref = encoder_layer_ref(x, mask, params)
    assert jnp.allclose(out, ref, rtol=1e-4, atol=1e-4), \
        float(jnp.max(jnp.abs(out - ref)))

    print("KERNEL_OK")
</pallas_src>

<mosaic_0001>
module attributes {stable_mosaic.version = 11 : i64} {
  func.func @encoder_layer_kernel(%arg0: i32, %arg1: memref<1x8x32xf32, #tpu.memory_space<vmem>>, %arg2: memref<1x1x8xf32, #tpu.memory_space<vmem>>, %arg3: memref<32x96xf32, #tpu.memory_space<vmem>>, %arg4: memref<1x96xf32, #tpu.memory_space<vmem>>, %arg5: memref<32x32xf32, #tpu.memory_space<vmem>>, %arg6: memref<1x32xf32, #tpu.memory_space<vmem>>, %arg7: memref<1x32xf32, #tpu.memory_space<vmem>>, %arg8: memref<1x32xf32, #tpu.memory_space<vmem>>, %arg9: memref<1x32xf32, #tpu.memory_space<vmem>>, %arg10: memref<1x32xf32, #tpu.memory_space<vmem>>, %arg11: memref<32x64xf32, #tpu.memory_space<vmem>>, %arg12: memref<1x64xf32, #tpu.memory_space<vmem>>, %arg13: memref<64x32xf32, #tpu.memory_space<vmem>>, %arg14: memref<1x32xf32, #tpu.memory_space<vmem>>, %arg15: memref<1x8x32xf32, #tpu.memory_space<vmem>>) attributes {dimension_semantics = [#tpu.dimension_semantics<parallel>], iteration_bounds = array<i64: 2>, scalar_prefetch = 0 : i64, scratch_operands = 0 : i64, tpu.core_type = #tpu.core_type<tc>, window_params = [{transform_indices = @transform_0, window_bounds = array<i64: 1, 8, 32>}, {transform_indices = @transform_1, window_bounds = array<i64: 1, 1, 8>}, {pipeline_mode = #tpu.pipeline_mode<synchronous>, transform_indices = @transform_2, window_bounds = array<i64: 32, 96>}, {pipeline_mode = #tpu.pipeline_mode<synchronous>, transform_indices = @transform_3, window_bounds = array<i64: 1, 96>}, {pipeline_mode = #tpu.pipeline_mode<synchronous>, transform_indices = @transform_4, window_bounds = array<i64: 32, 32>}, {pipeline_mode = #tpu.pipeline_mode<synchronous>, transform_indices = @transform_5, window_bounds = array<i64: 1, 32>}, {pipeline_mode = #tpu.pipeline_mode<synchronous>, transform_indices = @transform_6, window_bounds = array<i64: 1, 32>}, {pipeline_mode = #tpu.pipeline_mode<synchronous>, transform_indices = @transform_7, window_bounds = array<i64: 1, 32>}, {pipeline_mode = #tpu.pipeline_mode<synchronous>, transform_indices = @transform_8, window_bounds = array<i64: 1, 32>}, {pipeline_mode = #tpu.pipeline_mode<synchronous>, transform_indices = @transform_9, window_bounds = array<i64: 1, 32>}, {pipeline_mode = #tpu.pipeline_mode<synchronous>, transform_indices = @transform_10, window_bounds = array<i64: 32, 64>}, {pipeline_mode = #tpu.pipeline_mode<synchronous>, transform_indices = @transform_11, window_bounds = array<i64: 1, 64>}, {pipeline_mode = #tpu.pipeline_mode<synchronous>, transform_indices = @transform_12, window_bounds = array<i64: 64, 32>}, {pipeline_mode = #tpu.pipeline_mode<synchronous>, transform_indices = @transform_13, window_bounds = array<i64: 1, 32>}, {transform_indices = @transform_14, window_bounds = array<i64: 1, 8, 32>}]} {
    %c0 = arith.constant 0 : index
    %c0_0 = arith.constant 0 : index
    %c0_1 = arith.constant 0 : index
    %0 = vector.load %arg1[%c0, %c0_0, %c0_1] : memref<1x8x32xf32, #tpu.memory_space<vmem>>, vector<1x8x32xf32>
    %1 = vector.shape_cast %0 : vector<1x8x32xf32> to vector<8x32xf32>
    %c0_2 = arith.constant 0 : index
    %c0_3 = arith.constant 0 : index
    %c0_4 = arith.constant 0 : index
    %2 = vector.load %arg2[%c0_2, %c0_3, %c0_4] : memref<1x1x8xf32, #tpu.memory_space<vmem>>, vector<1x1x8xf32>
    %3 = vector.shape_cast %2 : vector<1x1x8xf32> to vector<1x8xf32>
    %c0_5 = arith.constant 0 : index
    %c0_6 = arith.constant 0 : index
    %4 = vector.load %arg7[%c0_5, %c0_6] : memref<1x32xf32, #tpu.memory_space<vmem>>, vector<1x32xf32>
    %c0_7 = arith.constant 0 : index
    %c0_8 = arith.constant 0 : index
    %5 = vector.load %arg8[%c0_7, %c0_8] : memref<1x32xf32, #tpu.memory_space<vmem>>, vector<1x32xf32>
    %cst = arith.constant dense<0.000000e+00> : vector<8xf32>
    %6 = vector.multi_reduction <add>, %1, %cst [1] : vector<8x32xf32> to vector<8xf32>
    %7 = vector.shape_cast %6 : vector<8xf32> to vector<8x1xf32>
    %cst_9 = arith.constant 3.200000e+01 : f32
    %8 = vector.broadcast %cst_9 : f32 to vector<8x1xf32>
    %9 = arith.divf %7, %8 : vector<8x1xf32>
    %10 = vector.broadcast %9 : vector<8x1xf32> to vector<8x32xf32>
    %11 = arith.subf %1, %10 : vector<8x32xf32>
    %12 = arith.mulf %11, %11 : vector<8x32xf32>
    %cst_10 = arith.constant dense<0.000000e+00> : vector<8xf32>
    %13 = vector.multi_reduction <add>, %12, %cst_10 [1] : vector<8x32xf32> to vector<8xf32>
    %14 = vector.shape_cast %13 : vector<8xf32> to vector<8x1xf32>
    %cst_11 = arith.constant 3.100000e+01 : f32
    %15 = vector.broadcast %cst_11 : f32 to vector<8x1xf32>
    %16 = arith.divf %14, %15 : vector<8x1xf32>
    %17 = math.sqrt %16 : vector<8x1xf32>
    %18 = vector.broadcast %9 : vector<8x1xf32> to vector<8x32xf32>
    %19 = arith.subf %1, %18 : vector<8x32xf32>
    %20 = vector.broadcast %4 : vector<1x32xf32> to vector<8x32xf32>
    %21 = arith.mulf %20, %19 : vector<8x32xf32>
    %cst_12 = arith.constant 9.99999997E-7 : f32
    %22 = vector.broadcast %cst_12 : f32 to vector<8x1xf32>
    %23 = arith.addf %17, %22 : vector<8x1xf32>
    %24 = vector.broadcast %23 : vector<8x1xf32> to vector<8x32xf32>
    %25 = arith.divf %21, %24 : vector<8x32xf32>
    %26 = vector.broadcast %5 : vector<1x32xf32> to vector<8x32xf32>
    %27 = arith.addf %25, %26 : vector<8x32xf32>
    %c0_13 = arith.constant 0 : index
    %c0_14 = arith.constant 0 : index
    %28 = vector.load %arg3[%c0_13, %c0_14] : memref<32x96xf32, #tpu.memory_space<vmem>>, vector<32x96xf32>
    %cst_15 = arith.constant dense<0.000000e+00> : vector<8x96xf32>
    %29 = tpu.matmul %27, %28, %cst_15 {dimension_numbers = #tpu.dot_dimension_numbers<[1], [0], [0], [1], [0, 0, 1, 1], [], []>} : vector<8x32xf32>, vector<32x96xf32>, vector<8x96xf32> -> vector<8x96xf32>
    %c0_16 = arith.constant 0 : index
    %c0_17 = arith.constant 0 : index
    %30 = vector.load %arg4[%c0_16, %c0_17] : memref<1x96xf32, #tpu.memory_space<vmem>>, vector<1x96xf32>
    %31 = vector.broadcast %30 : vector<1x96xf32> to vector<8x96xf32>
    %32 = arith.addf %29, %31 : vector<8x96xf32>
    %33 = vector.extract_strided_slice %32 {offsets = [0, 0], sizes = [8, 32], strides = [1, 1]} : vector<8x96xf32> to vector<8x32xf32>
    %34 = vector.extract_strided_slice %32 {offsets = [0, 32], sizes = [8, 32], strides = [1, 1]} : vector<8x96xf32> to vector<8x32xf32>
    %35 = vector.extract_strided_slice %32 {offsets = [0, 64], sizes = [8, 32], strides = [1, 1]} : vector<8x96xf32> to vector<8x32xf32>
    %cst_18 = arith.constant 0.000000e+00 : f32
    %36 = vector.broadcast %cst_18 : f32 to vector<8x32xf32>
    %37 = vector.extract_strided_slice %33 {offsets = [0, 0], sizes = [8, 8], strides = [1, 1]} : vector<8x32xf32> to vector<8x8xf32>
    %38 = vector.extract_strided_slice %34 {offsets = [0, 0], sizes = [8, 8], strides = [1, 1]} : vector<8x32xf32> to vector<8x8xf32>
    %39 = vector.extract_strided_slice %35 {offsets = [0, 0], sizes = [8, 8], strides = [1, 1]} : vector<8x32xf32> to vector<8x8xf32>
    %40 = tpu.transpose %38, [1, 0] : vector<8x8xf32> -> vector<8x8xf32>
    %cst_19 = arith.constant dense<0.000000e+00> : vector<8x8xf32>
    %41 = tpu.matmul %37, %40, %cst_19 {dimension_numbers = #tpu.dot_dimension_numbers<[1], [0], [0], [1], [0, 0, 1, 1], [], []>} : vector<8x8xf32>, vector<8x8xf32>, vector<8x8xf32> -> vector<8x8xf32>
    %cst_20 = arith.constant 0.353553385 : f32
    %42 = vector.broadcast %cst_20 : f32 to vector<8x8xf32>
    %43 = arith.mulf %41, %42 : vector<8x8xf32>
    %44 = vector.broadcast %3 : vector<1x8xf32> to vector<8x8xf32>
    %45 = arith.addf %43, %44 : vector<8x8xf32>
    %cst_21 = arith.constant dense<0xFF800000> : vector<8xf32>
    %46 = vector.multi_reduction <maximumf>, %45, %cst_21 [1] : vector<8x8xf32> to vector<8xf32>
    %cst_22 = arith.constant 0xFF800000 : f32
    %47 = vector.broadcast %cst_22 : f32 to vector<8xf32>
    %48 = arith.maximumf %47, %46 : vector<8xf32>
    %49 = vector.shape_cast %48 : vector<8xf32> to vector<8x1xf32>
    %50 = vector.broadcast %49 : vector<8x1xf32> to vector<8x8xf32>
    %51 = arith.subf %45, %50 : vector<8x8xf32>
    %52 = math.exp %51 : vector<8x8xf32>
    %cst_23 = arith.constant dense<0.000000e+00> : vector<8xf32>
    %53 = vector.multi_reduction <add>, %52, %cst_23 [1] : vector<8x8xf32> to vector<8xf32>
    %54 = vector.shape_cast %53 : vector<8xf32> to vector<8x1xf32>
    %55 = vector.broadcast %54 : vector<8x1xf32> to vector<8x8xf32>
    %56 = arith.divf %52, %55 : vector<8x8xf32>
    %cst_24 = arith.constant dense<0.000000e+00> : vector<8x8xf32>
    %57 = tpu.matmul %56, %39, %cst_24 {dimension_numbers = #tpu.dot_dimension_numbers<[1], [0], [0], [1], [0, 0, 1, 1], [], []>} : vector<8x8xf32>, vector<8x8xf32>, vector<8x8xf32> -> vector<8x8xf32>
    %c0_25 = arith.constant 0 : index
    %c0_26 = arith.constant 0 : index
    %58 = vector.load %arg5[%c0_25, %c0_26] : memref<32x32xf32, #tpu.memory_space<vmem>>, vector<8x32xf32>
    %cst_27 = arith.constant dense<0.000000e+00> : vector<8x32xf32>
    %59 = tpu.matmul %57, %58, %cst_27 {dimension_numbers = #tpu.dot_dimension_numbers<[1], [0], [0], [1], [0, 0, 1, 1], [], []>} : vector<8x8xf32>, vector<8x32xf32>, vector<8x32xf32> -> vector<8x32xf32>
    %60 = arith.addf %36, %59 : vector<8x32xf32>
    %61 = vector.extract_strided_slice %33 {offsets = [0, 8], sizes = [8, 8], strides = [1, 1]} : vector<8x32xf32> to vector<8x8xf32>
    %62 = vector.extract_strided_slice %34 {offsets = [0, 8], sizes = [8, 8], strides = [1, 1]} : vector<8x32xf32> to vector<8x8xf32>
    %63 = vector.extract_strided_slice %35 {offsets = [0, 8], sizes = [8, 8], strides = [1, 1]} : vector<8x32xf32> to vector<8x8xf32>
    %64 = tpu.transpose %62, [1, 0] : vector<8x8xf32> -> vector<8x8xf32>
    %cst_28 = arith.constant dense<0.000000e+00> : vector<8x8xf32>
    %65 = tpu.matmul %61, %64, %cst_28 {dimension_numbers = #tpu.dot_dimension_numbers<[1], [0], [0], [1], [0, 0, 1, 1], [], []>} : vector<8x8xf32>, vector<8x8xf32>, vector<8x8xf32> -> vector<8x8xf32>
    %cst_29 = arith.constant 0.353553385 : f32
    %66 = vector.broadcast %cst_29 : f32 to vector<8x8xf32>
    %67 = arith.mulf %65, %66 : vector<8x8xf32>
    %68 = vector.broadcast %3 : vector<1x8xf32> to vector<8x8xf32>
    %69 = arith.addf %67, %68 : vector<8x8xf32>
    %cst_30 = arith.constant dense<0xFF800000> : vector<8xf32>
    %70 = vector.multi_reduction <maximumf>, %69, %cst_30 [1] : vector<8x8xf32> to vector<8xf32>
    %cst_31 = arith.constant 0xFF800000 : f32
    %71 = vector.broadcast %cst_31 : f32 to vector<8xf32>
    %72 = arith.maximumf %71, %70 : vector<8xf32>
    %73 = vector.shape_cast %72 : vector<8xf32> to vector<8x1xf32>
    %74 = vector.broadcast %73 : vector<8x1xf32> to vector<8x8xf32>
    %75 = arith.subf %69, %74 : vector<8x8xf32>
    %76 = math.exp %75 : vector<8x8xf32>
    %cst_32 = arith.constant dense<0.000000e+00> : vector<8xf32>
    %77 = vector.multi_reduction <add>, %76, %cst_32 [1] : vector<8x8xf32> to vector<8xf32>
    %78 = vector.shape_cast %77 : vector<8xf32> to vector<8x1xf32>
    %79 = vector.broadcast %78 : vector<8x1xf32> to vector<8x8xf32>
    %80 = arith.divf %76, %79 : vector<8x8xf32>
    %cst_33 = arith.constant dense<0.000000e+00> : vector<8x8xf32>
    %81 = tpu.matmul %80, %63, %cst_33 {dimension_numbers = #tpu.dot_dimension_numbers<[1], [0], [0], [1], [0, 0, 1, 1], [], []>} : vector<8x8xf32>, vector<8x8xf32>, vector<8x8xf32> -> vector<8x8xf32>
    %c8 = arith.constant 8 : index
    %c0_34 = arith.constant 0 : index
    %82 = vector.load %arg5[%c8, %c0_34] : memref<32x32xf32, #tpu.memory_space<vmem>>, vector<8x32xf32>
    %cst_35 = arith.constant dense<0.000000e+00> : vector<8x32xf32>
    %83 = tpu.matmul %81, %82, %cst_35 {dimension_numbers = #tpu.dot_dimension_numbers<[1], [0], [0], [1], [0, 0, 1, 1], [], []>} : vector<8x8xf32>, vector<8x32xf32>, vector<8x32xf32> -> vector<8x32xf32>
    %84 = arith.addf %60, %83 : vector<8x32xf32>
    %85 = vector.extract_strided_slice %33 {offsets = [0, 16], sizes = [8, 8], strides = [1, 1]} : vector<8x32xf32> to vector<8x8xf32>
    %86 = vector.extract_strided_slice %34 {offsets = [0, 16], sizes = [8, 8], strides = [1, 1]} : vector<8x32xf32> to vector<8x8xf32>
    %87 = vector.extract_strided_slice %35 {offsets = [0, 16], sizes = [8, 8], strides = [1, 1]} : vector<8x32xf32> to vector<8x8xf32>
    %88 = tpu.transpose %86, [1, 0] : vector<8x8xf32> -> vector<8x8xf32>
    %cst_36 = arith.constant dense<0.000000e+00> : vector<8x8xf32>
    %89 = tpu.matmul %85, %88, %cst_36 {dimension_numbers = #tpu.dot_dimension_numbers<[1], [0], [0], [1], [0, 0, 1, 1], [], []>} : vector<8x8xf32>, vector<8x8xf32>, vector<8x8xf32> -> vector<8x8xf32>
    %cst_37 = arith.constant 0.353553385 : f32
    %90 = vector.broadcast %cst_37 : f32 to vector<8x8xf32>
    %91 = arith.mulf %89, %90 : vector<8x8xf32>
    %92 = vector.broadcast %3 : vector<1x8xf32> to vector<8x8xf32>
    %93 = arith.addf %91, %92 : vector<8x8xf32>
    %cst_38 = arith.constant dense<0xFF800000> : vector<8xf32>
    %94 = vector.multi_reduction <maximumf>, %93, %cst_38 [1] : vector<8x8xf32> to vector<8xf32>
    %cst_39 = arith.constant 0xFF800000 : f32
    %95 = vector.broadcast %cst_39 : f32 to vector<8xf32>
    %96 = arith.maximumf %95, %94 : vector<8xf32>
    %97 = vector.shape_cast %96 : vector<8xf32> to vector<8x1xf32>
    %98 = vector.broadcast %97 : vector<8x1xf32> to vector<8x8xf32>
    %99 = arith.subf %93, %98 : vector<8x8xf32>
    %100 = math.exp %99 : vector<8x8xf32>
    %cst_40 = arith.constant dense<0.000000e+00> : vector<8xf32>
    %101 = vector.multi_reduction <add>, %100, %cst_40 [1] : vector<8x8xf32> to vector<8xf32>
    %102 = vector.shape_cast %101 : vector<8xf32> to vector<8x1xf32>
    %103 = vector.broadcast %102 : vector<8x1xf32> to vector<8x8xf32>
    %104 = arith.divf %100, %103 : vector<8x8xf32>
    %cst_41 = arith.constant dense<0.000000e+00> : vector<8x8xf32>
    %105 = tpu.matmul %104, %87, %cst_41 {dimension_numbers = #tpu.dot_dimension_numbers<[1], [0], [0], [1], [0, 0, 1, 1], [], []>} : vector<8x8xf32>, vector<8x8xf32>, vector<8x8xf32> -> vector<8x8xf32>
    %c16 = arith.constant 16 : index
    %c0_42 = arith.constant 0 : index
    %106 = vector.load %arg5[%c16, %c0_42] : memref<32x32xf32, #tpu.memory_space<vmem>>, vector<8x32xf32>
    %cst_43 = arith.constant dense<0.000000e+00> : vector<8x32xf32>
    %107 = tpu.matmul %105, %106, %cst_43 {dimension_numbers = #tpu.dot_dimension_numbers<[1], [0], [0], [1], [0, 0, 1, 1], [], []>} : vector<8x8xf32>, vector<8x32xf32>, vector<8x32xf32> -> vector<8x32xf32>
    %108 = arith.addf %84, %107 : vector<8x32xf32>
    %109 = vector.extract_strided_slice %33 {offsets = [0, 24], sizes = [8, 8], strides = [1, 1]} : vector<8x32xf32> to vector<8x8xf32>
    %110 = vector.extract_strided_slice %34 {offsets = [0, 24], sizes = [8, 8], strides = [1, 1]} : vector<8x32xf32> to vector<8x8xf32>
    %111 = vector.extract_strided_slice %35 {offsets = [0, 24], sizes = [8, 8], strides = [1, 1]} : vector<8x32xf32> to vector<8x8xf32>
    %112 = tpu.transpose %110, [1, 0] : vector<8x8xf32> -> vector<8x8xf32>
    %cst_44 = arith.constant dense<0.000000e+00> : vector<8x8xf32>
    %113 = tpu.matmul %109, %112, %cst_44 {dimension_numbers = #tpu.dot_dimension_numbers<[1], [0], [0], [1], [0, 0, 1, 1], [], []>} : vector<8x8xf32>, vector<8x8xf32>, vector<8x8xf32> -> vector<8x8xf32>
    %cst_45 = arith.constant 0.353553385 : f32
    %114 = vector.broadcast %cst_45 : f32 to vector<8x8xf32>
    %115 = arith.mulf %113, %114 : vector<8x8xf32>
    %116 = vector.broadcast %3 : vector<1x8xf32> to vector<8x8xf32>
    %117 = arith.addf %115, %116 : vector<8x8xf32>
    %cst_46 = arith.constant dense<0xFF800000> : vector<8xf32>
    %118 = vector.multi_reduction <maximumf>, %117, %cst_46 [1] : vector<8x8xf32> to vector<8xf32>
    %cst_47 = arith.constant 0xFF800000 : f32
    %119 = vector.broadcast %cst_47 : f32 to vector<8xf32>
    %120 = arith.maximumf %119, %118 : vector<8xf32>
    %121 = vector.shape_cast %120 : vector<8xf32> to vector<8x1xf32>
    %122 = vector.broadcast %121 : vector<8x1xf32> to vector<8x8xf32>
    %123 = arith.subf %117, %122 : vector<8x8xf32>
    %124 = math.exp %123 : vector<8x8xf32>
    %cst_48 = arith.constant dense<0.000000e+00> : vector<8xf32>
    %125 = vector.multi_reduction <add>, %124, %cst_48 [1] : vector<8x8xf32> to vector<8xf32>
    %126 = vector.shape_cast %125 : vector<8xf32> to vector<8x1xf32>
    %127 = vector.broadcast %126 : vector<8x1xf32> to vector<8x8xf32>
    %128 = arith.divf %124, %127 : vector<8x8xf32>
    %cst_49 = arith.constant dense<0.000000e+00> : vector<8x8xf32>
    %129 = tpu.matmul %128, %111, %cst_49 {dimension_numbers = #tpu.dot_dimension_numbers<[1], [0], [0], [1], [0, 0, 1, 1], [], []>} : vector<8x8xf32>, vector<8x8xf32>, vector<8x8xf32> -> vector<8x8xf32>
    %c24 = arith.constant 24 : index
    %c0_50 = arith.constant 0 : index
    %130 = vector.load %arg5[%c24, %c0_50] : memref<32x32xf32, #tpu.memory_space<vmem>>, vector<8x32xf32>
    %cst_51 = arith.constant dense<0.000000e+00> : vector<8x32xf32>
    %131 = tpu.matmul %129, %130, %cst_51 {dimension_numbers = #tpu.dot_dimension_numbers<[1], [0], [0], [1], [0, 0, 1, 1], [], []>} : vector<8x8xf32>, vector<8x32xf32>, vector<8x32xf32> -> vector<8x32xf32>
    %132 = arith.addf %108, %131 : vector<8x32xf32>
    %133 = arith.addf %1, %132 : vector<8x32xf32>
    %c0_52 = arith.constant 0 : index
    %c0_53 = arith.constant 0 : index
    %134 = vector.load %arg6[%c0_52, %c0_53] : memref<1x32xf32, #tpu.memory_space<vmem>>, vector<1x32xf32>
    %135 = vector.broadcast %134 : vector<1x32xf32> to vector<8x32xf32>
    %136 = arith.addf %133, %135 : vector<8x32xf32>
    %c0_54 = arith.constant 0 : index
    %c0_55 = arith.constant 0 : index
    %137 = vector.load %arg9[%c0_54, %c0_55] : memref<1x32xf32, #tpu.memory_space<vmem>>, vector<1x32xf32>
    %c0_56 = arith.constant 0 : index
    %c0_57 = arith.constant 0 : index
    %138 = vector.load %arg10[%c0_56, %c0_57] : memref<1x32xf32, #tpu.memory_space<vmem>>, vector<1x32xf32>
    %cst_58 = arith.constant dense<0.000000e+00> : vector<8xf32>
    %139 = vector.multi_reduction <add>, %136, %cst_58 [1] : vector<8x32xf32> to vector<8xf32>
    %140 = vector.shape_cast %139 : vector<8xf32> to vector<8x1xf32>
    %cst_59 = arith.constant 3.200000e+01 : f32
    %141 = vector.broadcast %cst_59 : f32 to vector<8x1xf32>
    %142 = arith.divf %140, %141 : vector<8x1xf32>
    %143 = vector.broadcast %142 : vector<8x1xf32> to vector<8x32xf32>
    %144 = arith.subf %136, %143 : vector<8x32xf32>
    %145 = arith.mulf %144, %144 : vector<8x32xf32>
    %cst_60 = arith.constant dense<0.000000e+00> : vector<8xf32>
    %146 = vector.multi_reduction <add>, %145, %cst_60 [1] : vector<8x32xf32> to vector<8xf32>
    %147 = vector.shape_cast %146 : vector<8xf32> to vector<8x1xf32>
    %cst_61 = arith.constant 3.100000e+01 : f32
    %148 = vector.broadcast %cst_61 : f32 to vector<8x1xf32>
    %149 = arith.divf %147, %148 : vector<8x1xf32>
    %150 = math.sqrt %149 : vector<8x1xf32>
    %151 = vector.broadcast %142 : vector<8x1xf32> to vector<8x32xf32>
    %152 = arith.subf %136, %151 : vector<8x32xf32>
    %153 = vector.broadcast %137 : vector<1x32xf32> to vector<8x32xf32>
    %154 = arith.mulf %153, %152 : vector<8x32xf32>
    %cst_62 = arith.constant 9.99999997E-7 : f32
    %155 = vector.broadcast %cst_62 : f32 to vector<8x1xf32>
    %156 = arith.addf %150, %155 : vector<8x1xf32>
    %157 = vector.broadcast %156 : vector<8x1xf32> to vector<8x32xf32>
    %158 = arith.divf %154, %157 : vector<8x32xf32>
    %159 = vector.broadcast %138 : vector<1x32xf32> to vector<8x32xf32>
    %160 = arith.addf %158, %159 : vector<8x32xf32>
    %c0_63 = arith.constant 0 : index
    %c0_64 = arith.constant 0 : index
    %161 = vector.load %arg11[%c0_63, %c0_64] : memref<32x64xf32, #tpu.memory_space<vmem>>, vector<32x64xf32>
    %cst_65 = arith.constant dense<0.000000e+00> : vector<8x64xf32>
    %162 = tpu.matmul %160, %161, %cst_65 {dimension_numbers = #tpu.dot_dimension_numbers<[1], [0], [0], [1], [0, 0, 1, 1], [], []>} : vector<8x32xf32>, vector<32x64xf32>, vector<8x64xf32> -> vector<8x64xf32>
    %c0_66 = arith.constant 0 : index
    %c0_67 = arith.constant 0 : index
    %163 = vector.load %arg12[%c0_66, %c0_67] : memref<1x64xf32, #tpu.memory_space<vmem>>, vector<1x64xf32>
    %164 = vector.broadcast %163 : vector<1x64xf32> to vector<8x64xf32>
    %165 = arith.addf %162, %164 : vector<8x64xf32>
    %cst_68 = arith.constant 0.000000e+00 : f32
    %166 = vector.broadcast %cst_68 : f32 to vector<8x64xf32>
    %167 = arith.maximumf %165, %166 : vector<8x64xf32>
    %c0_69 = arith.constant 0 : index
    %c0_70 = arith.constant 0 : index
    %168 = vector.load %arg13[%c0_69, %c0_70] : memref<64x32xf32, #tpu.memory_space<vmem>>, vector<64x32xf32>
    %cst_71 = arith.constant dense<0.000000e+00> : vector<8x32xf32>
    %169 = tpu.matmul %167, %168, %cst_71 {dimension_numbers = #tpu.dot_dimension_numbers<[1], [0], [0], [1], [0, 0, 1, 1], [], []>} : vector<8x64xf32>, vector<64x32xf32>, vector<8x32xf32> -> vector<8x32xf32>
    %c0_72 = arith.constant 0 : index
    %c0_73 = arith.constant 0 : index
    %170 = vector.load %arg14[%c0_72, %c0_73] : memref<1x32xf32, #tpu.memory_space<vmem>>, vector<1x32xf32>
    %171 = vector.broadcast %170 : vector<1x32xf32> to vector<8x32xf32>
    %172 = arith.addf %169, %171 : vector<8x32xf32>
    %173 = arith.addf %136, %172 : vector<8x32xf32>
    %c0_74 = arith.constant 0 : index
    %c0_75 = arith.constant 0 : index
    %c0_76 = arith.constant 0 : index
    %174 = vector.load %arg15[%c0_74, %c0_75, %c0_76] : memref<1x8x32xf32, #tpu.memory_space<vmem>>, vector<1x8x32xf32>
    %175 = vector.shape_cast %174 : vector<1x8x32xf32> to vector<8x32xf32>
    %176 = vector.shape_cast %173 : vector<8x32xf32> to vector<1x8x32xf32>
    tpu.vector_store %arg15[%c0_74, %c0_75, %c0_76], %176 {strides = array<i32>} : memref<1x8x32xf32, #tpu.memory_space<vmem>>, vector<1x8x32xf32>,
    return
  }
  func.func @transform_0(%arg0: i32) -> (i32, i32, i32) {
    %c0_i32 = arith.constant 0 : i32
    %c0_i32_0 = arith.constant 0 : i32
    %c0_i32_1 = arith.constant 0 : i32
    return %arg0, %c0_i32, %c0_i32_0 : i32, i32, i32
  }
  func.func @transform_1(%arg0: i32) -> (i32, i32, i32) {
    %c0_i32 = arith.constant 0 : i32
    %c0_i32_0 = arith.constant 0 : i32
    %c0_i32_1 = arith.constant 0 : i32
    return %arg0, %c0_i32, %c0_i32_0 : i32, i32, i32
  }
  func.func @transform_2(%arg0: i32) -> (i32, i32) {
    %c0_i32 = arith.constant 0 : i32
    %c0_i32_0 = arith.constant 0 : i32
    %c0_i32_1 = arith.constant 0 : i32
    return %c0_i32, %c0_i32_0 : i32, i32
  }
  func.func @transform_3(%arg0: i32) -> (i32, i32) {
    %c0_i32 = arith.constant 0 : i32
    %c0_i32_0 = arith.constant 0 : i32
    %c0_i32_1 = arith.constant 0 : i32
    return %c0_i32, %c0_i32_0 : i32, i32
  }
  func.func @transform_4(%arg0: i32) -> (i32, i32) {
    %c0_i32 = arith.constant 0 : i32
    %c0_i32_0 = arith.constant 0 : i32
    %c0_i32_1 = arith.constant 0 : i32
    return %c0_i32, %c0_i32_0 : i32, i32
  }
  func.func @transform_5(%arg0: i32) -> (i32, i32) {
    %c0_i32 = arith.constant 0 : i32
    %c0_i32_0 = arith.constant 0 : i32
    %c0_i32_1 = arith.constant 0 : i32
    return %c0_i32, %c0_i32_0 : i32, i32
  }
  func.func @transform_6(%arg0: i32) -> (i32, i32) {
    %c0_i32 = arith.constant 0 : i32
    %c0_i32_0 = arith.constant 0 : i32
    %c0_i32_1 = arith.constant 0 : i32
    return %c0_i32, %c0_i32_0 : i32, i32
  }
  func.func @transform_7(%arg0: i32) -> (i32, i32) {
    %c0_i32 = arith.constant 0 : i32
    %c0_i32_0 = arith.constant 0 : i32
    %c0_i32_1 = arith.constant 0 : i32
    return %c0_i32, %c0_i32_0 : i32, i32
  }
  func.func @transform_8(%arg0: i32) -> (i32, i32) {
    %c0_i32 = arith.constant 0 : i32
    %c0_i32_0 = arith.constant 0 : i32
    %c0_i32_1 = arith.constant 0 : i32
    return %c0_i32, %c0_i32_0 : i32, i32
  }
  func.func @transform_9(%arg0: i32) -> (i32, i32) {
    %c0_i32 = arith.constant 0 : i32
    %c0_i32_0 = arith.constant 0 : i32
    %c0_i32_1 = arith.constant 0 : i32
    return %c0_i32, %c0_i32_0 : i32, i32
  }
  func.func @transform_10(%arg0: i32) -> (i32, i32) {
    %c0_i32 = arith.constant 0 : i32
    %c0_i32_0 = arith.constant 0 : i32
    %c0_i32_1 = arith.constant 0 : i32
    return %c0_i32, %c0_i32_0 : i32, i32
  }
  func.func @transform_11(%arg0: i32) -> (i32, i32) {
    %c0_i32 = arith.constant 0 : i32
    %c0_i32_0 = arith.constant 0 : i32
    %c0_i32_1 = arith.constant 0 : i32
    return %c0_i32, %c0_i32_0 : i32, i32
  }
  func.func @transform_12(%arg0: i32) -> (i32, i32) {
    %c0_i32 = arith.constant 0 : i32
    %c0_i32_0 = arith.constant 0 : i32
    %c0_i32_1 = arith.constant 0 : i32
    return %c0_i32, %c0_i32_0 : i32, i32
  }
  func.func @transform_13(%arg0: i32) -> (i32, i32) {
    %c0_i32 = arith.constant 0 : i32
    %c0_i32_0 = arith.constant 0 : i32
    %c0_i32_1 = arith.constant 0 : i32
    return %c0_i32, %c0_i32_0 : i32, i32
  }
  func.func @transform_14(%arg0: i32) -> (i32, i32, i32) {
    %c0_i32 = arith.constant 0 : i32
    %c0_i32_0 = arith.constant 0 : i32
    %c0_i32_1 = arith.constant 0 : i32
    return %arg0, %c0_i32, %c0_i32_0 : i32, i32, i32
  }
}

</mosaic_0001>

<llo_original>
// kernel: tpu_custom_call.1
$region0: #{tpu_custom_call.1}
  #allocation0 [shape = 'u32[]', space=smem, size = 0x4, offset = 0x4, fixed_abs, tag = 'smem constant byte address 0x4 - core index']
  #allocation1 [shape = 'u32[144,128]{1,0:T(1,128)}', space=vmem, size = 0x12000, scoped, tag = 'internal scratch']
  %s0 = inlined_call_operand.hbm [shape: f32[2,8,32], index: 0, kind: input, shape index: {}]
  %s1 = inlined_call_operand.hbm [shape: f32[2,1,8], index: 1, kind: input, shape index: {}]
  %s2 = inlined_call_operand.vmem [shape: f32[32,96], index: 2, kind: input, shape index: {}]
  %s3 = inlined_call_operand.vmem [shape: f32[1,96], index: 3, kind: input, shape index: {}]
  %s4 = inlined_call_operand.vmem [shape: f32[32,32], index: 4, kind: input, shape index: {}]
  %s5 = inlined_call_operand.vmem [shape: f32[1,32], index: 5, kind: input, shape index: {}]
  %s6 = inlined_call_operand.vmem [shape: f32[1,32], index: 6, kind: input, shape index: {}]
  %s7 = inlined_call_operand.vmem [shape: f32[1,32], index: 7, kind: input, shape index: {}]
  %s8 = inlined_call_operand.vmem [shape: f32[1,32], index: 8, kind: input, shape index: {}]
  %s9 = inlined_call_operand.vmem [shape: f32[1,32], index: 9, kind: input, shape index: {}]
  %s10 = inlined_call_operand.vmem [shape: f32[32,64], index: 10, kind: input, shape index: {}]
  %s11 = inlined_call_operand.vmem [shape: f32[1,64], index: 11, kind: input, shape index: {}]
  %s12 = inlined_call_operand.vmem [shape: f32[64,32], index: 12, kind: input, shape index: {}]
  %s13 = inlined_call_operand.vmem [shape: f32[1,32], index: 13, kind: input, shape index: {}]
  %s14 = inlined_call_operand.hbm [shape: f32[2,8,32], index: 14, kind: output, shape index: {}]
  %s15 = sld [smem:[#allocation0]]
  $region97: #{tpu_custom_call.1} parent=0
    _
  %s17 = ssub.s32 1, %s15
  %s18 = scalar_select 0, %s17, %s15
  $region1: #{tpu_custom_call.1} parent=0
    #allocation2 [shape = 'u8[8192]{0}', space=vmem, size = 0x2000, scoped, tag = 'input window, operand 0']
    #allocation3 [shape = 's32[2]{0}', space=sflag, size = 0x8, scoped, tag = 'scoped memory for tpu_custom_call.1']
    #allocation4 [shape = 's32[2]{0}', space=sflag, size = 0x8, scoped, tag = 'scoped memory for tpu_custom_call.1']
    #allocation5 [shape = 'u8[1024]{0}', space=vmem, size = 0x400, scoped, tag = 'input window, operand 1']
    #allocation6 [shape = 's32[2]{0}', space=sflag, size = 0x8, scoped, tag = 'scoped memory for tpu_custom_call.1']
    #allocation7 [shape = 'u8[8192]{0}', space=vmem, size = 0x2000, scoped, tag = 'output window, operand 0']
    %19 = vsyncpa [#allocation3], 0
    %s20 = scalar_lea.sflag [#allocation3], 1
    %21 = vsyncpa %s20, 0
    %22 = vsyncpa [#allocation6], 0
    %s23 = scalar_lea.sflag [#allocation6], 1
    %24 = vsyncpa %s23, 0
    %25 = vsyncpa [#allocation4], 0
    %s26 = scalar_lea.sflag [#allocation4], 1
    %27 = vsyncpa %s26, 0
    loop: start=0, step=1, limit=4
    $region2: #{tpu_custom_call.1} parent=1 // loop_pre_header
      _
    $region3: #{tpu_custom_call.1} parent=1 // loop_header
      %s29 = sphi 0, %s33
      %p30 = scmp.ge.s32.totalorder %s29, 4
      %s39 = sphi 0, %s41
      %s42 = sphi 0, %s39
      %s43 = sphi 0, %s42
      %s59 = sphi 0, %s43
      %s65 = sphi 0, %s67
      %s68 = sphi 0, %s65
      %s69 = sphi 0, %s68
      %s85 = sphi 0, %s69
      %s89 = sphi 0, %s89
      %s91 = sphi 0, %s89
      %s92 = sphi 0, %s91
      %s106 = sphi 0, %s92
      %s110 = sphi 0, %s110
      %s112 = sphi 0, %s110
      %s113 = sphi 0, %s112
      %s127 = sphi 0, %s113
      %s131 = sphi 0, %s131
      %s133 = sphi 0, %s131
      %s134 = sphi 0, %s133
      %s148 = sphi 0, %s134
      %s152 = sphi 0, %s152
      %s154 = sphi 0, %s152
      %s155 = sphi 0, %s154
      %s169 = sphi 0, %s155
      %s173 = sphi 0, %s173
      %s175 = sphi 0, %s173
      %s176 = sphi 0, %s175
      %s190 = sphi 0, %s176
      %s194 = sphi 0, %s194
      %s196 = sphi 0, %s194
      %s197 = sphi 0, %s196
      %s211 = sphi 0, %s197
      %s215 = sphi 0, %s215
      %s217 = sphi 0, %s215
      %s218 = sphi 0, %s217
      %s232 = sphi 0, %s218
      %s236 = sphi 0, %s236
      %s238 = sphi 0, %s236
      %s239 = sphi 0, %s238
      %s253 = sphi 0, %s239
      %s257 = sphi 0, %s257
      %s259 = sphi 0, %s257
      %s260 = sphi 0, %s259
      %s274 = sphi 0, %s260
      %s278 = sphi 0, %s278
      %s280 = sphi 0, %s278
      %s281 = sphi 0, %s280
      %s295 = sphi 0, %s281
      %s299 = sphi 0, %s299
      %s301 = sphi 0, %s299
      %s302 = sphi 0, %s301
      %s316 = sphi 0, %s302
      %s320 = sphi 0, %s320
      %s322 = sphi 0, %s320
      %s323 = sphi 0, %s322
      %s337 = sphi 0, %s323
      %s343 = sphi 0, %s345
      %s346 = sphi 0, %s343
      %s347 = sphi 0, %s346
      %s363 = sphi 0, %s347
    $region4: #{tpu_custom_call.1} parent=1 // loop_header_branch
      %32 = sbr.rel (%p30) target = $region8
    $region5: #{tpu_custom_call.1} parent=1 // loop_body
      %s34 = ssub.s32 %s29, 1
      %s35 = ssub.s32 %s29, 2
      %s36 = sadd.s32 %s29, 1
      %s37 = ssub.s32 %s29, %s36
      %p38 = scmp.eq.s32.totalorder %s37, 0
      %s40 = sadd.s32 %s39, 1
      %s41 = scalar_select %p38, %s39, %s40
      %p44 = pneg %p38
      %p45 = scmp.eq.s32.totalorder %s29, 1
      %p46 = por %p44, %p45
      %p47 = scmp.ne.s32.totalorder %s39, %s42
      %p48 = scmp.eq.s32.totalorder %s29, 0
      %p49 = por %p47, %p48
      %p50 = scmp.ne.s32.totalorder %s39, %s42
      %p51 = scmp.eq.s32.totalorder %s34, 1
      %p52 = por %p50, %p51
      %p53 = scmp.ne.s32.totalorder %s42, %s43
      %p54 = scmp.eq.s32.totalorder %s34, 0
      %p55 = por %p53, %p54
      %p56 = scmp.ne.s32.totalorder %s42, %s43
      %p57 = scmp.eq.s32.totalorder %s35, 1
      %p58 = por %p56, %p57
      %p60 = scmp.ne.s32.totalorder %s43, %s59
      %p61 = scmp.eq.s32.totalorder %s35, 0
      %p62 = por %p60, %p61
      %s63 = ssub.s32 %s29, %s36
      %p64 = scmp.eq.s32.totalorder %s63, 0
      %s66 = sadd.s32 %s65, 1
      %s67 = scalar_select %p64, %s65, %s66
      %p70 = pneg %p64
      %p71 = scmp.eq.s32.totalorder %s29, 1
      %p72 = por %p70, %p71
      %p73 = scmp.ne.s32.totalorder %s65, %s68
      %p74 = scmp.eq.s32.totalorder %s29, 0
      %p75 = por %p73, %p74
      %p76 = scmp.ne.s32.totalorder %s65, %s68
      %p77 = scmp.eq.s32.totalorder %s34, 1
      %p78 = por %p76, %p77
      %p79 = scmp.ne.s32.totalorder %s68, %s69
      %p80 = scmp.eq.s32.totalorder %s34, 0
      %p81 = por %p79, %p80
      %p82 = scmp.ne.s32.totalorder %s68, %s69
      %p83 = scmp.eq.s32.totalorder %s35, 1
      %p84 = por %p82, %p83
      %p86 = scmp.ne.s32.totalorder %s69, %s85
      %p87 = scmp.eq.s32.totalorder %s35, 0
      %p88 = por %p86, %p87
      %s90 = sadd.s32 %s89, 1
      %p93 = scmp.eq.s32.totalorder %s29, 1
      %p94 = scmp.ne.s32.totalorder %s89, %s91
      %p95 = scmp.eq.s32.totalorder %s29, 0
      %p96 = por %p94, %p95
      %p97 = scmp.ne.s32.totalorder %s89, %s91
      %p98 = scmp.eq.s32.totalorder %s34, 1
      %p99 = por %p97, %p98
      %p100 = scmp.ne.s32.totalorder %s91, %s92
      %p101 = scmp.eq.s32.totalorder %s34, 0
      %p102 = por %p100, %p101
      %p103 = scmp.ne.s32.totalorder %s91, %s92
      %p104 = scmp.eq.s32.totalorder %s35, 1
      %p105 = por %p103, %p104
      %p107 = scmp.ne.s32.totalorder %s92, %s106
      %p108 = scmp.eq.s32.totalorder %s35, 0
      %p109 = por %p107, %p108
      %s111 = sadd.s32 %s110, 1
      %p114 = scmp.eq.s32.totalorder %s29, 1
      %p115 = scmp.ne.s32.totalorder %s110, %s112
      %p116 = scmp.eq.s32.totalorder %s29, 0
      %p117 = por %p115, %p116
      %p118 = scmp.ne.s32.totalorder %s110, %s112
      %p119 = scmp.eq.s32.totalorder %s34, 1
      %p120 = por %p118, %p119
      %p121 = scmp.ne.s32.totalorder %s112, %s113
      %p122 = scmp.eq.s32.totalorder %s34, 0
      %p123 = por %p121, %p122
      %p124 = scmp.ne.s32.totalorder %s112, %s113
      %p125 = scmp.eq.s32.totalorder %s35, 1
      %p126 = por %p124, %p125
      %p128 = scmp.ne.s32.totalorder %s113, %s127
      %p129 = scmp.eq.s32.totalorder %s35, 0
      %p130 = por %p128, %p129
      %s132 = sadd.s32 %s131, 1
      %p135 = scmp.eq.s32.totalorder %s29, 1
      %p136 = scmp.ne.s32.totalorder %s131, %s133
      %p137 = scmp.eq.s32.totalorder %s29, 0
      %p138 = por %p136, %p137
      %p139 = scmp.ne.s32.totalorder %s131, %s133
      %p140 = scmp.eq.s32.totalorder %s34, 1
      %p141 = por %p139, %p140
      %p142 = scmp.ne.s32.totalorder %s133, %s134
      %p143 = scmp.eq.s32.totalorder %s34, 0
      %p144 = por %p142, %p143
      %p145 = scmp.ne.s32.totalorder %s133, %s134
      %p146 = scmp.eq.s32.totalorder %s35, 1
      %p147 = por %p145, %p146
      %p149 = scmp.ne.s32.totalorder %s134, %s148
      %p150 = scmp.eq.s32.totalorder %s35, 0
      %p151 = por %p149, %p150
      %s153 = sadd.s32 %s152, 1
      %p156 = scmp.eq.s32.totalorder %s29, 1
      %p157 = scmp.ne.s32.totalorder %s152, %s154
      %p158 = scmp.eq.s32.totalorder %s29, 0
      %p159 = por %p157, %p158
      %p160 = scmp.ne.s32.totalorder %s152, %s154
      %p161 = scmp.eq.s32.totalorder %s34, 1
      %p162 = por %p160, %p161
      %p163 = scmp.ne.s32.totalorder %s154, %s155
      %p164 = scmp.eq.s32.totalorder %s34, 0
      %p165 = por %p163, %p164
      %p166 = scmp.ne.s32.totalorder %s154, %s155
      %p167 = scmp.eq.s32.totalorder %s35, 1
      %p168 = por %p166, %p167
      %p170 = scmp.ne.s32.totalorder %s155, %s169
      %p171 = scmp.eq.s32.totalorder %s35, 0
      %p172 = por %p170, %p171
      %s174 = sadd.s32 %s173, 1
      %p177 = scmp.eq.s32.totalorder %s29, 1
      %p178 = scmp.ne.s32.totalorder %s173, %s175
      %p179 = scmp.eq.s32.totalorder %s29, 0
      %p180 = por %p178, %p179
      %p181 = scmp.ne.s32.totalorder %s173, %s175
      %p182 = scmp.eq.s32.totalorder %s34, 1
      %p183 = por %p181, %p182
      %p184 = scmp.ne.s32.totalorder %s175, %s176
      %p185 = scmp.eq.s32.totalorder %s34, 0
      %p186 = por %p184, %p185
      %p187 = scmp.ne.s32.totalorder %s175, %s176
      %p188 = scmp.eq.s32.totalorder %s35, 1
      %p189 = por %p187, %p188
      %p191 = scmp.ne.s32.totalorder %s176, %s190
      %p192 = scmp.eq.s32.totalorder %s35, 0
      %p193 = por %p191, %p192
      %s195 = sadd.s32 %s194, 1
      %p198 = scmp.eq.s32.totalorder %s29, 1
      %p199 = scmp.ne.s32.totalorder %s194, %s196
      %p200 = scmp.eq.s32.totalorder %s29, 0
      %p201 = por %p199, %p200
      %p202 = scmp.ne.s32.totalorder %s194, %s196
      %p203 = scmp.eq.s32.totalorder %s34, 1
      %p204 = por %p202, %p203
      %p205 = scmp.ne.s32.totalorder %s196, %s197
      %p206 = scmp.eq.s32.totalorder %s34, 0
      %p207 = por %p205, %p206
      %p208 = scmp.ne.s32.totalorder %s196, %s197
      %p209 = scmp.eq.s32.totalorder %s35, 1
      %p210 = por %p208, %p209
      %p212 = scmp.ne.s32.totalorder %s197, %s211
      %p213 = scmp.eq.s32.totalorder %s35, 0
      %p214 = por %p212, %p213
      %s216 = sadd.s32 %s215, 1
      %p219 = scmp.eq.s32.totalorder %s29, 1
      %p220 = scmp.ne.s32.totalorder %s215, %s217
      %p221 = scmp.eq.s32.totalorder %s29, 0
      %p222 = por %p220, %p221
      %p223 = scmp.ne.s32.totalorder %s215, %s217
      %p224 = scmp.eq.s32.totalorder %s34, 1
      %p225 = por %p223, %p224
      %p226 = scmp.ne.s32.totalorder %s217, %s218
      %p227 = scmp.eq.s32.totalorder %s34, 0
      %p228 = por %p226, %p227
      %p229 = scmp.ne.s32.totalorder %s217, %s218
      %p230 = scmp.eq.s32.totalorder %s35, 1
      %p231 = por %p229, %p230
      %p233 = scmp.ne.s32.totalorder %s218, %s232
      %p234 = scmp.eq.s32.totalorder %s35, 0
      %p235 = por %p233, %p234
      %s237 = sadd.s32 %s236, 1
      %p240 = scmp.eq.s32.totalorder %s29, 1
      %p241 = scmp.ne.s32.totalorder %s236, %s238
      %p242 = scmp.eq.s32.totalorder %s29, 0
      %p243 = por %p241, %p242
      %p244 = scmp.ne.s32.totalorder %s236, %s238
      %p245 = scmp.eq.s32.totalorder %s34, 1
      %p246 = por %p244, %p245
      %p247 = scmp.ne.s32.totalorder %s238, %s239
      %p248 = scmp.eq.s32.totalorder %s34, 0
      %p249 = por %p247, %p248
      %p250 = scmp.ne.s32.totalorder %s238, %s239
      %p251 = scmp.eq.s32.totalorder %s35, 1
      %p252 = por %p250, %p251
      %p254 = scmp.ne.s32.totalorder %s239, %s253
      %p255 = scmp.eq.s32.totalorder %s35, 0
      %p256 = por %p254, %p255
      %s258 = sadd.s32 %s257, 1
      %p261 = scmp.eq.s32.totalorder %s29, 1
      %p262 = scmp.ne.s32.totalorder %s257, %s259
      %p263 = scmp.eq.s32.totalorder %s29, 0
      %p264 = por %p262, %p263
      %p265 = scmp.ne.s32.totalorder %s257, %s259
      %p266 = scmp.eq.s32.totalorder %s34, 1
      %p267 = por %p265, %p266
      %p268 = scmp.ne.s32.totalorder %s259, %s260
      %p269 = scmp.eq.s32.totalorder %s34, 0
      %p270 = por %p268, %p269
      %p271 = scmp.ne.s32.totalorder %s259, %s260
      %p272 = scmp.eq.s32.totalorder %s35, 1
      %p273 = por %p271, %p272
      %p275 = scmp.ne.s32.totalorder %s260, %s274
      %p276 = scmp.eq.s32.totalorder %s35, 0
      %p277 = por %p275, %p276
      %s279 = sadd.s32 %s278, 1
      %p282 = scmp.eq.s32.totalorder %s29, 1
      %p283 = scmp.ne.s32.totalorder %s278, %s280
      %p284 = scmp.eq.s32.totalorder %s29, 0
      %p285 = por %p283, %p284
      %p286 = scmp.ne.s32.totalorder %s278, %s280
      %p287 = scmp.eq.s32.totalorder %s34, 1
      %p288 = por %p286, %p287
      %p289 = scmp.ne.s32.totalorder %s280, %s281
      %p290 = scmp.eq.s32.totalorder %s34, 0
      %p291 = por %p289, %p290
      %p292 = scmp.ne.s32.totalorder %s280, %s281
      %p293 = scmp.eq.s32.totalorder %s35, 1
      %p294 = por %p292, %p293
      %p296 = scmp.ne.s32.totalorder %s281, %s295
      %p297 = scmp.eq.s32.totalorder %s35, 0
      %p298 = por %p296, %p297
      %s300 = sadd.s32 %s299, 1
      %p303 = scmp.eq.s32.totalorder %s29, 1
      %p304 = scmp.ne.s32.totalorder %s299, %s301
      %p305 = scmp.eq.s32.totalorder %s29, 0
      %p306 = por %p304, %p305
      %p307 = scmp.ne.s32.totalorder %s299, %s301
      %p308 = scmp.eq.s32.totalorder %s34, 1
      %p309 = por %p307, %p308
      %p310 = scmp.ne.s32.totalorder %s301, %s302
      %p311 = scmp.eq.s32.totalorder %s34, 0
      %p312 = por %p310, %p311
      %p313 = scmp.ne.s32.totalorder %s301, %s302
      %p314 = scmp.eq.s32.totalorder %s35, 1
      %p315 = por %p313, %p314
      %p317 = scmp.ne.s32.totalorder %s302, %s316
      %p318 = scmp.eq.s32.totalorder %s35, 0
      %p319 = por %p317, %p318
      %s321 = sadd.s32 %s320, 1
      %p324 = scmp.eq.s32.totalorder %s29, 1
      %p325 = scmp.ne.s32.totalorder %s320, %s322
      %p326 = scmp.eq.s32.totalorder %s29, 0
      %p327 = por %p325, %p326
      %p328 = scmp.ne.s32.totalorder %s320, %s322
      %p329 = scmp.eq.s32.totalorder %s34, 1
      %p330 = por %p328, %p329
      %p331 = scmp.ne.s32.totalorder %s322, %s323
      %p332 = scmp.eq.s32.totalorder %s34, 0
      %p333 = por %p331, %p332
      %p334 = scmp.ne.s32.totalorder %s322, %s323
      %p335 = scmp.eq.s32.totalorder %s35, 1
      %p336 = por %p334, %p335
      %p338 = scmp.ne.s32.totalorder %s323, %s337
      %p339 = scmp.eq.s32.totalorder %s35, 0
      %p340 = por %p338, %p339
      %s341 = ssub.s32 %s29, %s36
      %p342 = scmp.eq.s32.totalorder %s341, 0
      %s344 = sadd.s32 %s343, 1
      %s345 = scalar_select %p342, %s343, %s344
      %p348 = pneg %p342
      %p349 = scmp.eq.s32.totalorder %s29, 1
      %p350 = por %p348, %p349
      %p351 = scmp.ne.s32.totalorder %s343, %s346
      %p352 = scmp.eq.s32.totalorder %s29, 0
      %p353 = por %p351, %p352
      %p354 = scmp.ne.s32.totalorder %s343, %s346
      %p355 = scmp.eq.s32.totalorder %s34, 1
      %p356 = por %p354, %p355
      %p357 = scmp.ne.s32.totalorder %s346, %s347
      %p358 = scmp.eq.s32.totalorder %s34, 0
      %p359 = por %p357, %p358
      %p360 = scmp.ne.s32.totalorder %s346, %s347
      %p361 = scmp.eq.s32.totalorder %s35, 1
      %p362 = por %p360, %p361
      %p364 = scmp.ne.s32.totalorder %s347, %s363
      %p365 = scmp.eq.s32.totalorder %s35, 0
      %p366 = por %p364, %p365
      %p367 = scmp.le.s32.totalorder 1, %s29
      %p368 = scmp.lt.s32.totalorder %s29, 3
      %p369 = pnand %p367, %p368
      %p370 = pneg %p369
      // Predicated region
      $region9: #{tpu_custom_call.1} parent=5 // pred_check
        _
      $region10: #{tpu_custom_call.1} parent=5 // pred_check_branch
        %372 = sbr.rel (%p369) target = $region12
      $region11: #{tpu_custom_call.1} parent=5 // pred_region
        %s373 = ssub.s32 %s29, 1
        // Predicated region
        $region13: #{tpu_custom_call.1} parent=11 // pred_check
          %p374 = pneg %p102
        $region14: #{tpu_custom_call.1} parent=11 // pred_check_branch
          %376 = sbr.rel (%p374) target = $region16
        $region15: #{tpu_custom_call.1} parent=11 // pred_region
          _
        $region16: #{tpu_custom_call.1} parent=11 // pred_fallthru
          _
        // Predicated region
        $region17: #{tpu_custom_call.1} parent=11 // pred_check
          %p377 = pneg %p123
        $region18: #{tpu_custom_call.1} parent=11 // pred_check_branch
          %379 = sbr.rel (%p377) target = $region20
        $region19: #{tpu_custom_call.1} parent=11 // pred_region
          _
        $region20: #{tpu_custom_call.1} parent=11 // pred_fallthru
          _
        // Predicated region
        $region21: #{tpu_custom_call.1} parent=11 // pred_check
          %p380 = pneg %p144
        $region22: #{tpu_custom_call.1} parent=11 // pred_check_branch
          %382 = sbr.rel (%p380) target = $region24
        $region23: #{tpu_custom_call.1} parent=11 // pred_region
          _
        $region24: #{tpu_custom_call.1} parent=11 // pred_fallthru
          _
        // Predicated region
        $region25: #{tpu_custom_call.1} parent=11 // pred_check
          %p383 = pneg %p165
        $region26: #{tpu_custom_call.1} parent=11 // pred_check_branch
          %385 = sbr.rel (%p383) target = $region28
        $region27: #{tpu_custom_call.1} parent=11 // pred_region
          _
        $region28: #{tpu_custom_call.1} parent=11 // pred_fallthru
          _
        // Predicated region
        $region29: #{tpu_custom_call.1} parent=11 // pred_check
          %p386 = pneg %p186
        $region30: #{tpu_custom_call.1} parent=11 // pred_check_branch
          %388 = sbr.rel (%p386) target = $region32
        $region31: #{tpu_custom_call.1} parent=11 // pred_region
          _
        $region32: #{tpu_custom_call.1} parent=11 // pred_fallthru
          _
        // Predicated region
        $region33: #{tpu_custom_call.1} parent=11 // pred_check
          %p389 = pneg %p207
        $region34: #{tpu_custom_call.1} parent=11 // pred_check_branch
          %391 = sbr.rel (%p389) target = $region36
        $region35: #{tpu_custom_call.1} parent=11 // pred_region
          _
        $region36: #{tpu_custom_call.1} parent=11 // pred_fallthru
          _
        // Predicated region
        $region37: #{tpu_custom_call.1} parent=11 // pred_check
          %p392 = pneg %p228
        $region38: #{tpu_custom_call.1} parent=11 // pred_check_branch
          %394 = sbr.rel (%p392) target = $region40
        $region39: #{tpu_custom_call.1} parent=11 // pred_region
          _
        $region40: #{tpu_custom_call.1} parent=11 // pred_fallthru
          _
        // Predicated region
        $region41: #{tpu_custom_call.1} parent=11 // pred_check
          %p395 = pneg %p249
        $region42: #{tpu_custom_call.1} parent=11 // pred_check_branch
          %397 = sbr.rel (%p395) target = $region44
        $region43: #{tpu_custom_call.1} parent=11 // pred_region
          _
        $region44: #{tpu_custom_call.1} parent=11 // pred_fallthru
          _
        // Predicated region
        $region45: #{tpu_custom_call.1} parent=11 // pred_check
          %p398 = pneg %p270
        $region46: #{tpu_custom_call.1} parent=11 // pred_check_branch
          %400 = sbr.rel (%p398) target = $region48
        $region47: #{tpu_custom_call.1} parent=11 // pred_region
          _
        $region48: #{tpu_custom_call.1} parent=11 // pred_fallthru
          _
        // Predicated region
        $region49: #{tpu_custom_call.1} parent=11 // pred_check
          %p401 = pneg %p291
        $region50: #{tpu_custom_call.1} parent=11 // pred_check_branch
          %403 = sbr.rel (%p401) target = $region52
        $region51: #{tpu_custom_call.1} parent=11 // pred_region
          _
        $region52: #{tpu_custom_call.1} parent=11 // pred_fallthru
          _
        // Predicated region
        $region53: #{tpu_custom_call.1} parent=11 // pred_check
          %p404 = pneg %p312
        $region54: #{tpu_custom_call.1} parent=11 // pred_check_branch
          %406 = sbr.rel (%p404) target = $region56
        $region55: #{tpu_custom_call.1} parent=11 // pred_region
          _
        $region56: #{tpu_custom_call.1} parent=11 // pred_fallthru
          _
        // Predicated region
        $region57: #{tpu_custom_call.1} parent=11 // pred_check
          %p407 = pneg %p333
        $region58: #{tpu_custom_call.1} parent=11 // pred_check_branch
          %409 = sbr.rel (%p407) target = $region60
        $region59: #{tpu_custom_call.1} parent=11 // pred_region
          _
        $region60: #{tpu_custom_call.1} parent=11 // pred_fallthru
          _
      $region12: #{tpu_custom_call.1} parent=5 // pred_fallthru
        _
      %p410 = scmp.lt.s32.totalorder %s29, 2
      // Predicated region
      $region61: #{tpu_custom_call.1} parent=5 // pred_check
        %p411 = pneg %p410
      $region62: #{tpu_custom_call.1} parent=5 // pred_check_branch
        %413 = sbr.rel (%p411) target = $region64
      $region63: #{tpu_custom_call.1} parent=5 // pred_region
        // Predicated region
        $region65: #{tpu_custom_call.1} parent=63 // pred_check
          %p414 = pneg %p49
        $region66: #{tpu_custom_call.1} parent=63 // pred_check_branch
          %416 = sbr.rel (%p414) target = $region68
        $region67: #{tpu_custom_call.1} parent=63 // pred_region
          %s417 = sand.u32 %s39, 1
          %s418 = scalar_lea.sflag [#allocation3], %s417
          %s419 = sand.u32 %s39, 1
          %s420 = smul.addr %s419, 8
          %s421 = scalar_lea.vmem [#allocation2], %s420
          %s423 = ssub.s32 128, 128
          %424 = vsyncadd %s418, %s423
          %s425 = smul.addr %s29, 128
          %s426 = scalar_lea.hbm %s0, %s425
          %s428 = sshll.u32 %s421, 4
          %s429 = int_to_ptr.vmem [resolvable:$true] %s428
          %431 = dma.hbm_to_vmem [thread:$0]  %s426, 128, %s429, %s418
        $region68: #{tpu_custom_call.1} parent=63 // pred_fallthru
          _
        // Predicated region
        $region69: #{tpu_custom_call.1} parent=63 // pred_check
          %p432 = pneg %p75
        $region70: #{tpu_custom_call.1} parent=63 // pred_check_branch
          %434 = sbr.rel (%p432) target = $region72
        $region71: #{tpu_custom_call.1} parent=63 // pred_region
          %s435 = sand.u32 %s65, 1
          %s436 = scalar_lea.sflag [#allocation6], %s435
          %s437 = sand.u32 %s65, 1
          %s438 = scalar_lea.vmem [#allocation5], %s437
          %s440 = ssub.s32 16, 16
          %441 = vsyncadd %s436, %s440
          %s442 = smul.addr %s29, 16
          %s443 = scalar_lea.hbm %s1, %s442
          %s445 = sshll.u32 %s438, 4
          %s446 = int_to_ptr.vmem [resolvable:$true] %s445
          %448 = dma.hbm_to_vmem [thread:$0]  %s443, 16, %s446, %s436
        $region72: #{tpu_custom_call.1} parent=63 // pred_fallthru
          _
      $region64: #{tpu_custom_call.1} parent=5 // pred_fallthru
        _
      %p449 = scmp.le.s32.totalorder 1, %s29
      %p450 = scmp.lt.s32.totalorder %s29, 3
      %p451 = pnand %p449, %p450
      %p452 = pneg %p451
      // Predicated region
      $region73: #{tpu_custom_call.1} parent=5 // pred_check
        _
      $region74: #{tpu_custom_call.1} parent=5 // pred_check_branch
        %454 = sbr.rel (%p451) target = $region76
      $region75: #{tpu_custom_call.1} parent=5 // pred_region
        %s455 = ssub.s32 %s29, 1
        %s456 = sand.u32 %s42, 1
        %s457 = scalar_lea.sflag [#allocation3], %s456
        %s458 = sand.u32 %s42, 1
        %s459 = smul.addr %s458, 8
        %s460 = scalar_lea.vmem [#allocation2], %s459
        // Predicated region
        $region77: #{tpu_custom_call.1} parent=75 // pred_check
          %p461 = pneg %p55
        $region78: #{tpu_custom_call.1} parent=75 // pred_check_branch
          %463 = sbr.rel (%p461) target = $region80
        $region79: #{tpu_custom_call.1} parent=75 // pred_region
          %464 = dma.done %s457, 128
        $region80: #{tpu_custom_call.1} parent=75 // pred_fallthru
          _
        %s465 = sand.u32 %s68, 1
        %s466 = scalar_lea.sflag [#allocation6], %s465
        %s467 = sand.u32 %s68, 1
        %s468 = scalar_lea.vmem [#allocation5], %s467
        // Predicated region
        $region81: #{tpu_custom_call.1} parent=75 // pred_check
          %p469 = pneg %p81
        $region82: #{tpu_custom_call.1} parent=75 // pred_check_branch
          %471 = sbr.rel (%p469) target = $region84
        $region83: #{tpu_custom_call.1} parent=75 // pred_region
          %472 = dma.done %s466, 16
        $region84: #{tpu_custom_call.1} parent=75 // pred_fallthru
          _
        %s473 = sand.u32 %s42, 1
        %s474 = scalar_lea.sflag [#allocation3], %s473
        %s475 = sand.u32 %s42, 1
        %s476 = smul.addr %s475, 8
        %s477 = scalar_lea.vmem [#allocation2], %s476
        %p478 = pneg %p55
        %p479 = pneg %p52
        %s480 = sand.u32 %s68, 1
        %s481 = scalar_lea.sflag [#allocation6], %s480
        %s482 = sand.u32 %s68, 1
        %s483 = scalar_lea.vmem [#allocation5], %s482
        %p484 = pneg %p81
        %p485 = pneg %p78
        %p486 = pneg %p102
        %p487 = pneg %p99
        %p488 = pneg %p123
        %p489 = pneg %p120
        %p490 = pneg %p144
        %p491 = pneg %p141
        %p492 = pneg %p165
        %p493 = pneg %p162
        %p494 = pneg %p186
        %p495 = pneg %p183
        %p496 = pneg %p207
        %p497 = pneg %p204
        %p498 = pneg %p228
        %p499 = pneg %p225
        %p500 = pneg %p249
        %p501 = pneg %p246
        %p502 = pneg %p270
        %p503 = pneg %p267
        %p504 = pneg %p291
        %p505 = pneg %p288
        %p506 = pneg %p312
        %p507 = pneg %p309
        %p508 = pneg %p333
        %p509 = pneg %p330
        %p510 = pneg %p359
        %p511 = pneg %p356
        %s512 = sand.u32 %s346, 1
        %s513 = scalar_lea.sflag [#allocation4], %s512
        %s514 = sand.u32 %s346, 1
        %s515 = smul.addr %s514, 8
        %s516 = scalar_lea.vmem [#allocation7], %s515
        %v517 = vld [vmem:[%s460] sm:$0xff]
        %v518 = vld [vmem:[%s468] sm:$0x1]
        %v519 = vld [vmem:[%s6] sm:$0x1]
        %v520 = vld [vmem:[%s7] sm:$0x1]
        %vm521 = vcmask 261120
        %v522 = vsel %vm521, %v517, 0.0
        %523 = vadd.xlane.f32.xlu0 %v522
        %v524 = vpop.xlane.xlu0 %523
        %v525 = vrcp.pop 32.0
        %v526 = vmul.f32 %v524, %v525
        %v527 = vsub.f32 %v517, %v526
        %v528 = vmul.f32 %v527, %v527
        %v529 = vsel %vm521, %v528, 0.0
        %530 = vadd.xlane.f32.xlu0 %v529
        %v531 = vpop.xlane.xlu0 %530
        %v532 = vrcp.pop 31.0
        %v533 = vmul.f32 %v531, %v532
        %v534 = vrsqrt.pop %v533
        %v535 = vmul.f32 %v533, %v534
        %vm536 = vcmp.eq.f32.partialorder %v533, inf
        %v537 = vsel %vm536, %v533, %v535
        %vm538 = vcmp.eq.f32.partialorder %v533, 0.0
        %v539 = vand.u32 %v533, 2147483648
        %v540 = vsel %vm538, %v539, %v537
        %v542 = vlaneseq
        %v543 = vshrl.u32 %v542, 7
        %v544 = vsub.s32 0, %v543
        %v545 = vrot.slane %v519, %v544
        %v547 = vmul.f32 %v545, %v527
        %v548 = vadd.f32 %v540, 1e-06
        %v549 = vrcp.pop %v548
        %v550 = vmul.f32 %v547, %v549
        %v552 = vlaneseq
        %v553 = vshrl.u32 %v552, 7
        %v554 = vsub.s32 0, %v553
        %v555 = vrot.slane %v520, %v554
        %v557 = vadd.f32 %v550, %v555
        %v558 = vld [vmem:[%s2] sm:$0xff]
        %v559 = vld [vmem:[%s2 + $0x8] sm:$0xff]
        %v560 = vld [vmem:[%s2 + $0x10] sm:$0xff]
        %v561 = vld [vmem:[%s2 + $0x18] sm:$0xff]
        %v562 = vld [vmem:[%s3] sm:$0x1]
        %v564 = vlaneseq
        %v565 = vshrl.u32 %v564, 7
        %v566 = vsub.s32 0, %v565
        %v567 = vrot.slane %v562, %v566
        %v570 = vsel %vm521, %v557, 0
        %572 = vmatprep.subr.mxu0 0.0
        %573 = vmatpush1.msra.mxu0 0.0
        %574 = vmatprep.subr.mxu0 0.0
        %575 = vmatpush1.msra.mxu0 0.0
        %576 = vmatprep.subr.mxu0 0.0
        %577 = vmatpush1.msra.mxu0 0.0
        %578 = vmatprep.subr.mxu0 0.0
        %579 = vmatpush1.msra.mxu0 0.0
        %580 = vmatprep.subr.mxu0 0.0
        %581 = vmatpush1.msra.mxu0 0.0
        %582 = vmatprep.subr.mxu0 0.0
        %583 = vmatpush1.msra.mxu0 0.0
        %584 = vmatprep.subr.mxu0 0.0
        %585 = vmatpush1.msra.mxu0 0.0
        %586 = vmatprep.subr.mxu0 0.0
        %587 = vmatpush1.msra.mxu0 0.0
        %588 = vmatprep.subr.mxu0 0.0
        %589 = vmatpush1.msra.mxu0 0.0
        %590 = vmatprep.subr.mxu0 0.0
        %591 = vmatpush1.msra.mxu0 0.0
        %592 = vmatprep.subr.mxu0 0.0
        %593 = vmatpush1.msra.mxu0 0.0
        %594 = vmatprep.subr.mxu0 0.0
        %595 = vmatpush1.msra.mxu0 0.0
        %596 = vmatprep.subr.mxu0 0.0
        %597 = vmatpush1.msra.mxu0 %v561
        %598 = vmatprep.subr.mxu0 0.0
        %599 = vmatpush1.msra.mxu0 %v560
        %600 = vmatprep.subr.mxu0 0.0
        %601 = vmatpush1.msra.mxu0 %v559
        %602 = vmatprep.subr.mxu0 0.0
        %603 = vmatpush1.msra.mxu0 %v558
        %604 = vmatprep.subr.mxu0 0.0
        %605 = vmatpush2.msra.mxu0 0.0
        %606 = vmatprep.subr.mxu0 0.0
        %607 = vmatpush2.msra.mxu0 0.0
        %608 = vmatprep.subr.mxu0 0.0
        %609 = vmatpush2.msra.mxu0 0.0
        %610 = vmatprep.subr.mxu0 0.0
        %611 = vmatpush2.msra.mxu0 0.0
        %612 = vmatprep.subr.mxu0 0.0
        %613 = vmatpush2.msra.mxu0 0.0
        %614 = vmatprep.subr.mxu0 0.0
        %615 = vmatpush2.msra.mxu0 0.0
        %616 = vmatprep.subr.mxu0 0.0
        %617 = vmatpush2.msra.mxu0 0.0
        %618 = vmatprep.subr.mxu0 0.0
        %619 = vmatpush2.msra.mxu0 0.0
        %620 = vmatprep.subr.mxu0 0.0
        %621 = vmatpush2.msra.mxu0 0.0
        %622 = vmatprep.subr.mxu0 0.0
        %623 = vmatpush2.msra.mxu0 0.0
        %624 = vmatprep.subr.mxu0 0.0
        %625 = vmatpush2.msra.mxu0 0.0
        %626 = vmatprep.subr.mxu0 0.0
        %627 = vmatpush2.msra.mxu0 0.0
        %628 = vmatprep.subr.mxu0 0.0
        %629 = vmatpush2.msra.mxu0 0.0
        %630 = vmatprep.subr.mxu0 0.0
        %631 = vmatpush2.msra.mxu0 0.0
        %632 = vmatprep.subr.mxu0 0.0
        %633 = vmatpush2.msra.mxu0 0.0
        %634 = vmatprep.subr.mxu0 0.0
        %635 = vmatpush2.msra.mxu0 0.0
        %636 = vmatprep.mubr.f32.mxu0 0.0
        %637 = vmatmul.mubr.f32.gmra.mxu0 %v570
        %v638 = vpop.f32.mrf.mxu0
        %v639 = vadd.f32 %v567, %v638
        %v640 = vpop.f32.mrf.mxu0
        %641 = vdwg.mxu0
        %643 = vrot.lane.b32.xlu0 %v639, 96
        %v644 = vpop.permute.xlu0 %643
        %vm645 = vcmask 64512
        %v646 = vsel %vm645, %v639, 0
        %v648 = vsel %vm645, %v644, 0
        %650 = vmatprep.subr.mxu0 0.0
        %651 = vmatpush1.xpose.msra.mxu0 0.0
        %652 = vmatprep.subr.mxu0 0.0
        %653 = vmatpush1.xpose.msra.mxu0 0.0
        %654 = vmatprep.subr.mxu0 0.0
        %655 = vmatpush1.xpose.msra.mxu0 0.0
        %656 = vmatprep.subr.mxu0 0.0
        %657 = vmatpush1.xpose.msra.mxu0 0.0
        %658 = vmatprep.subr.mxu0 0.0
        %659 = vmatpush1.xpose.msra.mxu0 0.0
        %660 = vmatprep.subr.mxu0 0.0
        %661 = vmatpush1.xpose.msra.mxu0 0.0
        %662 = vmatprep.subr.mxu0 0.0
        %663 = vmatpush1.xpose.msra.mxu0 0.0
        %664 = vmatprep.subr.mxu0 0.0
        %665 = vmatpush1.xpose.msra.mxu0 0.0
        %666 = vmatprep.subr.mxu0 0.0
        %667 = vmatpush1.xpose.msra.mxu0 0.0
        %668 = vmatprep.subr.mxu0 0.0
        %669 = vmatpush1.xpose.msra.mxu0 0.0
        %670 = vmatprep.subr.mxu0 0.0
        %671 = vmatpush1.xpose.msra.mxu0 0.0
        %672 = vmatprep.subr.mxu0 0.0
        %673 = vmatpush1.xpose.msra.mxu0 0.0
        %674 = vmatprep.subr.mxu0 0.0
        %675 = vmatpush1.xpose.msra.mxu0 0.0
        %676 = vmatprep.subr.mxu0 0.0
        %677 = vmatpush1.xpose.msra.mxu0 0.0
        %678 = vmatprep.subr.mxu0 0.0
        %679 = vmatpush1.xpose.msra.mxu0 0.0
        %680 = vmatprep.subr.mxu0 0.0
        %681 = vmatpush1.xpose.msra.mxu0 %v648
        %682 = vmatprep.subr.mxu0 0.0
        %683 = vmatpush2.xpose.msra.mxu0 0.0
        %684 = vmatprep.subr.mxu0 0.0
        %685 = vmatpush2.xpose.msra.mxu0 0.0
        %686 = vmatprep.subr.mxu0 0.0
        %687 = vmatpush2.xpose.msra.mxu0 0.0
        %688 = vmatprep.subr.mxu0 0.0
        %689 = vmatpush2.xpose.msra.mxu0 0.0
        %690 = vmatprep.subr.mxu0 0.0
        %691 = vmatpush2.xpose.msra.mxu0 0.0
        %692 = vmatprep.subr.mxu0 0.0
        %693 = vmatpush2.xpose.msra.mxu0 0.0
        %694 = vmatprep.subr.mxu0 0.0
        %695 = vmatpush2.xpose.msra.mxu0 0.0
        %696 = vmatprep.subr.mxu0 0.0
        %697 = vmatpush2.xpose.msra.mxu0 0.0
        %698 = vmatprep.subr.mxu0 0.0
        %699 = vmatpush2.xpose.msra.mxu0 0.0
        %700 = vmatprep.subr.mxu0 0.0
        %701 = vmatpush2.xpose.msra.mxu0 0.0
        %702 = vmatprep.subr.mxu0 0.0
        %703 = vmatpush2.xpose.msra.mxu0 0.0
        %704 = vmatprep.subr.mxu0 0.0
        %705 = vmatpush2.xpose.msra.mxu0 0.0
        %706 = vmatprep.subr.mxu0 0.0
        %707 = vmatpush2.xpose.msra.mxu0 0.0
        %708 = vmatprep.subr.mxu0 0.0
        %709 = vmatpush2.xpose.msra.mxu0 0.0
        %710 = vmatprep.subr.mxu0 0.0
        %711 = vmatpush2.xpose.msra.mxu0 0.0
        %712 = vmatprep.subr.mxu0 0.0
        %713 = vmatpush2.xpose.msra.mxu0 0.0
        %714 = vmatprep.mubr.f32.mxu0 0.0
        %715 = vmatmul.mubr.f32.gmra.mxu0 %v646
        %v716 = vpop.f32.mrf.mxu0
        %v717 = vadd.f32 0.0, %v716
        %v718 = vpop.f32.mrf.mxu0
        %719 = vdwg.mxu0
        %v720 = vmul.f32 %v717, 0.35355338
        %v722 = vlaneseq
        %v723 = vshrl.u32 %v722, 7
        %v724 = vsub.s32 0, %v723
        %v725 = vrot.slane %v518, %v724
        %v727 = vadd.f32 %v720, %v725
        %v728 = vsel %vm645, %v727, -inf
        %729 = vmax.xlane.f32.xlu0 %v728
        %v730 = vpop.xlane.xlu0 %729
        %v731 = vsub.f32 %v727, %v730
        %v732 = vmul.f32 %v731, 1.442695
        %v733 = vpow.pop %v732
        %v734 = vsel %vm645, %v733, 0.0
        %735 = vadd.xlane.f32.xlu0 %v734
        %v736 = vpop.xlane.xlu0 %735
        %v737 = vrcp.pop %v736
        %v738 = vmul.f32 %v733, %v737
        %739 = vrot.lane.b32.xlu0 %v639, 64
        %v740 = vpop.permute.xlu0 %739
        %v743 = vsel %vm645, %v738, 0
        %745 = vmatprep.subr.mxu0 0.0
        %746 = vmatpush1.msra.mxu0 0.0
        %747 = vmatprep.subr.mxu0 0.0
        %748 = vmatpush1.msra.mxu0 0.0
        %749 = vmatprep.subr.mxu0 0.0
        %750 = vmatpush1.msra.mxu0 0.0
        %751 = vmatprep.subr.mxu0 0.0
        %752 = vmatpush1.msra.mxu0 0.0
        %753 = vmatprep.subr.mxu0 0.0
        %754 = vmatpush1.msra.mxu0 0.0
        %755 = vmatprep.subr.mxu0 0.0
        %756 = vmatpush1.msra.mxu0 0.0
        %757 = vmatprep.subr.mxu0 0.0
        %758 = vmatpush1.msra.mxu0 0.0
        %759 = vmatprep.subr.mxu0 0.0
        %760 = vmatpush1.msra.mxu0 0.0
        %761 = vmatprep.subr.mxu0 0.0
        %762 = vmatpush1.msra.mxu0 0.0
        %763 = vmatprep.subr.mxu0 0.0
        %764 = vmatpush1.msra.mxu0 0.0
        %765 = vmatprep.subr.mxu0 0.0
        %766 = vmatpush1.msra.mxu0 0.0
        %767 = vmatprep.subr.mxu0 0.0
        %768 = vmatpush1.msra.mxu0 0.0
        %769 = vmatprep.subr.mxu0 0.0
        %770 = vmatpush1.msra.mxu0 0.0
        %771 = vmatprep.subr.mxu0 0.0
        %772 = vmatpush1.msra.mxu0 0.0
        %773 = vmatprep.subr.mxu0 0.0
        %774 = vmatpush1.msra.mxu0 0.0
        %775 = vmatprep.subr.mxu0 0.0
        %776 = vmatpush1.msra.mxu0 %v740
        %777 = vmatprep.subr.mxu0 0.0
        %778 = vmatpush2.msra.mxu0 0.0
        %779 = vmatprep.subr.mxu0 0.0
        %780 = vmatpush2.msra.mxu0 0.0
        %781 = vmatprep.subr.mxu0 0.0
        %782 = vmatpush2.msra.mxu0 0.0
        %783 = vmatprep.subr.mxu0 0.0
        %784 = vmatpush2.msra.mxu0 0.0
        %785 = vmatprep.subr.mxu0 0.0
        %786 = vmatpush2.msra.mxu0 0.0
        %787 = vmatprep.subr.mxu0 0.0
        %788 = vmatpush2.msra.mxu0 0.0
        %789 = vmatprep.subr.mxu0 0.0
        %790 = vmatpush2.msra.mxu0 0.0
        %791 = vmatprep.subr.mxu0 0.0
        %792 = vmatpush2.msra.mxu0 0.0
        %793 = vmatprep.subr.mxu0 0.0
        %794 = vmatpush2.msra.mxu0 0.0
        %795 = vmatprep.subr.mxu0 0.0
        %796 = vmatpush2.msra.mxu0 0.0
        %797 = vmatprep.subr.mxu0 0.0
        %798 = vmatpush2.msra.mxu0 0.0
        %799 = vmatprep.subr.mxu0 0.0
        %800 = vmatpush2.msra.mxu0 0.0
        %801 = vmatprep.subr.mxu0 0.0
        %802 = vmatpush2.msra.mxu0 0.0
        %803 = vmatprep.subr.mxu0 0.0
        %804 = vmatpush2.msra.mxu0 0.0
        %805 = vmatprep.subr.mxu0 0.0
        %806 = vmatpush2.msra.mxu0 0.0
        %807 = vmatprep.subr.mxu0 0.0
        %808 = vmatpush2.msra.mxu0 0.0
        %809 = vmatprep.mubr.f32.mxu0 0.0
        %810 = vmatmul.mubr.f32.gmra.mxu0 %v743
        %v811 = vpop.f32.mrf.mxu0
        %v812 = vadd.f32 0.0, %v811
        %v813 = vpop.f32.mrf.mxu0
        %814 = vdwg.mxu0
        %v815 = vld [vmem:[%s4] sm:$0xff]
        %816 = vrot.lane.b32.xlu0 %v639, 120
        %v817 = vpop.permute.xlu0 %816
        %818 = vrot.lane.b32.xlu0 %v639, 88
        %v819 = vpop.permute.xlu0 %818
        %v820 = vsel %vm645, %v817, 0
        %v822 = vsel %vm645, %v819, 0
        %824 = vmatprep.subr.mxu0 0.0
        %825 = vmatpush1.xpose.msra.mxu0 0.0
        %826 = vmatprep.subr.mxu0 0.0
        %827 = vmatpush1.xpose.msra.mxu0 0.0
        %828 = vmatprep.subr.mxu0 0.0
        %829 = vmatpush1.xpose.msra.mxu0 0.0
        %830 = vmatprep.subr.mxu0 0.0
        %831 = vmatpush1.xpose.msra.mxu0 0.0
        %832 = vmatprep.subr.mxu0 0.0
        %833 = vmatpush1.xpose.msra.mxu0 0.0
        %834 = vmatprep.subr.mxu0 0.0
        %835 = vmatpush1.xpose.msra.mxu0 0.0
        %836 = vmatprep.subr.mxu0 0.0
        %837 = vmatpush1.xpose.msra.mxu0 0.0
        %838 = vmatprep.subr.mxu0 0.0
        %839 = vmatpush1.xpose.msra.mxu0 0.0
        %840 = vmatprep.subr.mxu0 0.0
        %841 = vmatpush1.xpose.msra.mxu0 0.0
        %842 = vmatprep.subr.mxu0 0.0
        %843 = vmatpush1.xpose.msra.mxu0 0.0
        %844 = vmatprep.subr.mxu0 0.0
        %845 = vmatpush1.xpose.msra.mxu0 0.0
        %846 = vmatprep.subr.mxu0 0.0
        %847 = vmatpush1.xpose.msra.mxu0 0.0
        %848 = vmatprep.subr.mxu0 0.0
        %849 = vmatpush1.xpose.msra.mxu0 0.0
        %850 = vmatprep.subr.mxu0 0.0
        %851 = vmatpush1.xpose.msra.mxu0 0.0
        %852 = vmatprep.subr.mxu0 0.0
        %853 = vmatpush1.xpose.msra.mxu0 0.0
        %854 = vmatprep.subr.mxu0 0.0
        %855 = vmatpush1.xpose.msra.mxu0 %v822
        %856 = vmatprep.subr.mxu0 0.0
        %857 = vmatpush2.xpose.msra.mxu0 0.0
        %858 = vmatprep.subr.mxu0 0.0
        %859 = vmatpush2.xpose.msra.mxu0 0.0
        %860 = vmatprep.subr.mxu0 0.0
        %861 = vmatpush2.xpose.msra.mxu0 0.0
        %862 = vmatprep.subr.mxu0 0.0
        %863 = vmatpush2.xpose.msra.mxu0 0.0
        %864 = vmatprep.subr.mxu0 0.0
        %865 = vmatpush2.xpose.msra.mxu0 0.0
        %866 = vmatprep.subr.mxu0 0.0
        %867 = vmatpush2.xpose.msra.mxu0 0.0
        %868 = vmatprep.subr.mxu0 0.0
        %869 = vmatpush2.xpose.msra.mxu0 0.0
        %870 = vmatprep.subr.mxu0 0.0
        %871 = vmatpush2.xpose.msra.mxu0 0.0
        %872 = vmatprep.subr.mxu0 0.0
        %873 = vmatpush2.xpose.msra.mxu0 0.0
        %874 = vmatprep.subr.mxu0 0.0
        %875 = vmatpush2.xpose.msra.mxu0 0.0
        %876 = vmatprep.subr.mxu0 0.0
        %877 = vmatpush2.xpose.msra.mxu0 0.0
        %878 = vmatprep.subr.mxu0 0.0
        %879 = vmatpush2.xpose.msra.mxu0 0.0
        %880 = vmatprep.subr.mxu0 0.0
        %881 = vmatpush2.xpose.msra.mxu0 0.0
        %882 = vmatprep.subr.mxu0 0.0
        %883 = vmatpush2.xpose.msra.mxu0 0.0
        %884 = vmatprep.subr.mxu0 0.0
        %885 = vmatpush2.xpose.msra.mxu0 0.0
        %886 = vmatprep.subr.mxu0 0.0
        %887 = vmatpush2.xpose.msra.mxu0 0.0
        %888 = vmatprep.mubr.f32.mxu0 0.0
        %889 = vmatmul.mubr.f32.gmra.mxu0 %v820
        %v890 = vpop.f32.mrf.mxu0
        %v891 = vadd.f32 0.0, %v890
        %v892 = vpop.f32.mrf.mxu0
        %893 = vdwg.mxu0
        %v894 = vmul.f32 %v891, 0.35355338
        %v895 = vadd.f32 %v894, %v725
        %v896 = vsel %vm645, %v895, -inf
        %897 = vmax.xlane.f32.xlu0 %v896
        %v898 = vpop.xlane.xlu0 %897
        %v899 = vsub.f32 %v895, %v898
        %v900 = vmul.f32 %v899, 1.442695
        %v901 = vpow.pop %v900
        %v902 = vsel %vm645, %v901, 0.0
        %903 = vadd.xlane.f32.xlu0 %v902
        %v904 = vpop.xlane.xlu0 %903
        %v905 = vrcp.pop %v904
        %v906 = vmul.f32 %v901, %v905
        %907 = vrot.lane.b32.xlu0 %v639, 56
        %v908 = vpop.permute.xlu0 %907
        %v911 = vsel %vm645, %v906, 0
        %913 = vmatprep.subr.mxu0 0.0
        %914 = vmatpush1.msra.mxu0 0.0
        %915 = vmatprep.subr.mxu0 0.0
        %916 = vmatpush1.msra.mxu0 0.0
        %917 = vmatprep.subr.mxu0 0.0
        %918 = vmatpush1.msra.mxu0 0.0
        %919 = vmatprep.subr.mxu0 0.0
        %920 = vmatpush1.msra.mxu0 0.0
        %921 = vmatprep.subr.mxu0 0.0
        %922 = vmatpush1.msra.mxu0 0.0
        %923 = vmatprep.subr.mxu0 0.0
        %924 = vmatpush1.msra.mxu0 0.0
        %925 = vmatprep.subr.mxu0 0.0
        %926 = vmatpush1.msra.mxu0 0.0
        %927 = vmatprep.subr.mxu0 0.0
        %928 = vmatpush1.msra.mxu0 0.0
        %929 = vmatprep.subr.mxu0 0.0
        %930 = vmatpush1.msra.mxu0 0.0
        %931 = vmatprep.subr.mxu0 0.0
        %932 = vmatpush1.msra.mxu0 0.0
        %933 = vmatprep.subr.mxu0 0.0
        %934 = vmatpush1.msra.mxu0 0.0
        %935 = vmatprep.subr.mxu0 0.0
        %936 = vmatpush1.msra.mxu0 0.0
        %937 = vmatprep.subr.mxu0 0.0
        %938 = vmatpush1.msra.mxu0 0.0
        %939 = vmatprep.subr.mxu0 0.0
        %940 = vmatpush1.msra.mxu0 0.0
        %941 = vmatprep.subr.mxu0 0.0
        %942 = vmatpush1.msra.mxu0 0.0
        %943 = vmatprep.subr.mxu0 0.0
        %944 = vmatpush1.msra.mxu0 %v908
        %945 = vmatprep.subr.mxu0 0.0
        %946 = vmatpush2.msra.mxu0 0.0
        %947 = vmatprep.subr.mxu0 0.0
        %948 = vmatpush2.msra.mxu0 0.0
        %949 = vmatprep.subr.mxu0 0.0
        %950 = vmatpush2.msra.mxu0 0.0
        %951 = vmatprep.subr.mxu0 0.0
        %952 = vmatpush2.msra.mxu0 0.0
        %953 = vmatprep.subr.mxu0 0.0
        %954 = vmatpush2.msra.mxu0 0.0
        %955 = vmatprep.subr.mxu0 0.0
        %956 = vmatpush2.msra.mxu0 0.0
        %957 = vmatprep.subr.mxu0 0.0
        %958 = vmatpush2.msra.mxu0 0.0
        %959 = vmatprep.subr.mxu0 0.0
        %960 = vmatpush2.msra.mxu0 0.0
        %961 = vmatprep.subr.mxu0 0.0
        %962 = vmatpush2.msra.mxu0 0.0
        %963 = vmatprep.subr.mxu0 0.0
        %964 = vmatpush2.msra.mxu0 0.0
        %965 = vmatprep.subr.mxu0 0.0
        %966 = vmatpush2.msra.mxu0 0.0
        %967 = vmatprep.subr.mxu0 0.0
        %968 = vmatpush2.msra.mxu0 0.0
        %969 = vmatprep.subr.mxu0 0.0
        %970 = vmatpush2.msra.mxu0 0.0
        %971 = vmatprep.subr.mxu0 0.0
        %972 = vmatpush2.msra.mxu0 0.0
        %973 = vmatprep.subr.mxu0 0.0
        %974 = vmatpush2.msra.mxu0 0.0
        %975 = vmatprep.subr.mxu0 0.0
        %976 = vmatpush2.msra.mxu0 0.0
        %977 = vmatprep.mubr.f32.mxu0 0.0
        %978 = vmatmul.mubr.f32.gmra.mxu0 %v911
        %v979 = vpop.f32.mrf.mxu0
        %v980 = vadd.f32 0.0, %v979
        %v981 = vpop.f32.mrf.mxu0
        %982 = vdwg.mxu0
        %v983 = vld [vmem:[%s4 + $0x8] sm:$0xff]
        %v985 = vsel %vm645, %v980, 0
        %987 = vmatprep.subr.mxu0 0.0
        %988 = vmatpush1.msra.mxu0 0.0
        %989 = vmatprep.subr.mxu0 0.0
        %990 = vmatpush1.msra.mxu0 0.0
        %991 = vmatprep.subr.mxu0 0.0
        %992 = vmatpush1.msra.mxu0 0.0
        %993 = vmatprep.subr.mxu0 0.0
        %994 = vmatpush1.msra.mxu0 0.0
        %995 = vmatprep.subr.mxu0 0.0
        %996 = vmatpush1.msra.mxu0 0.0
        %997 = vmatprep.subr.mxu0 0.0
        %998 = vmatpush1.msra.mxu0 0.0
        %999 = vmatprep.subr.mxu0 0.0
        %1000 = vmatpush1.msra.mxu0 0.0
        %1001 = vmatprep.subr.mxu0 0.0
        %1002 = vmatpush1.msra.mxu0 0.0
        %1003 = vmatprep.subr.mxu0 0.0
        %1004 = vmatpush1.msra.mxu0 0.0
        %1005 = vmatprep.subr.mxu0 0.0
        %1006 = vmatpush1.msra.mxu0 0.0
        %1007 = vmatprep.subr.mxu0 0.0
        %1008 = vmatpush1.msra.mxu0 0.0
        %1009 = vmatprep.subr.mxu0 0.0
        %1010 = vmatpush1.msra.mxu0 0.0
        %1011 = vmatprep.subr.mxu0 0.0
        %1012 = vmatpush1.msra.mxu0 0.0
        %1013 = vmatprep.subr.mxu0 0.0
        %1014 = vmatpush1.msra.mxu0 0.0
        %1015 = vmatprep.subr.mxu0 0.0
        %1016 = vmatpush1.msra.mxu0 0.0
        %1017 = vmatprep.subr.mxu0 0.0
        %1018 = vmatpush1.msra.mxu0 %v983
        %1019 = vmatprep.subr.mxu0 0.0
        %1020 = vmatpush2.msra.mxu0 0.0
        %1021 = vmatprep.subr.mxu0 0.0
        %1022 = vmatpush2.msra.mxu0 0.0
        %1023 = vmatprep.subr.mxu0 0.0
        %1024 = vmatpush2.msra.mxu0 0.0
        %1025 = vmatprep.subr.mxu0 0.0
        %1026 = vmatpush2.msra.mxu0 0.0
        %1027 = vmatprep.subr.mxu0 0.0
        %1028 = vmatpush2.msra.mxu0 0.0
        %1029 = vmatprep.subr.mxu0 0.0
        %1030 = vmatpush2.msra.mxu0 0.0
        %1031 = vmatprep.subr.mxu0 0.0
        %1032 = vmatpush2.msra.mxu0 0.0
        %1033 = vmatprep.subr.mxu0 0.0
        %1034 = vmatpush2.msra.mxu0 0.0
        %1035 = vmatprep.subr.mxu0 0.0
        %1036 = vmatpush2.msra.mxu0 0.0
        %1037 = vmatprep.subr.mxu0 0.0
        %1038 = vmatpush2.msra.mxu0 0.0
        %1039 = vmatprep.subr.mxu0 0.0
        %1040 = vmatpush2.msra.mxu0 0.0
        %1041 = vmatprep.subr.mxu0 0.0
        %1042 = vmatpush2.msra.mxu0 0.0
        %1043 = vmatprep.subr.mxu0 0.0
        %1044 = vmatpush2.msra.mxu0 0.0
        %1045 = vmatprep.subr.mxu0 0.0
        %1046 = vmatpush2.msra.mxu0 0.0
        %1047 = vmatprep.subr.mxu0 0.0
        %1048 = vmatpush2.msra.mxu0 0.0
        %1049 = vmatprep.subr.mxu0 0.0
        %1050 = vmatpush2.msra.mxu0 0.0
        %1051 = vmatprep.mubr.f32.mxu0 0.0
        %1052 = vmatmul.mubr.f32.gmra.mxu0 %v985
        %v1053 = vpop.f32.mrf.mxu0
        %v1054 = vadd.f32 0.0, %v1053
        %v1055 = vpop.f32.mrf.mxu0
        %1056 = vdwg.mxu0
        %v1058 = vsel %vm645, %v812, 0
        %1060 = vmatprep.subr.mxu0 0.0
        %1061 = vmatpush1.msra.mxu0 0.0
        %1062 = vmatprep.subr.mxu0 0.0
        %1063 = vmatpush1.msra.mxu0 0.0
        %1064 = vmatprep.subr.mxu0 0.0
        %1065 = vmatpush1.msra.mxu0 0.0
        %1066 = vmatprep.subr.mxu0 0.0
        %1067 = vmatpush1.msra.mxu0 0.0
        %1068 = vmatprep.subr.mxu0 0.0
        %1069 = vmatpush1.msra.mxu0 0.0
        %1070 = vmatprep.subr.mxu0 0.0
        %1071 = vmatpush1.msra.mxu0 0.0
        %1072 = vmatprep.subr.mxu0 0.0
        %1073 = vmatpush1.msra.mxu0 0.0
        %1074 = vmatprep.subr.mxu0 0.0
        %1075 = vmatpush1.msra.mxu0 0.0
        %1076 = vmatprep.subr.mxu0 0.0
        %1077 = vmatpush1.msra.mxu0 0.0
        %1078 = vmatprep.subr.mxu0 0.0
        %1079 = vmatpush1.msra.mxu0 0.0
        %1080 = vmatprep.subr.mxu0 0.0
        %1081 = vmatpush1.msra.mxu0 0.0
        %1082 = vmatprep.subr.mxu0 0.0
        %1083 = vmatpush1.msra.mxu0 0.0
        %1084 = vmatprep.subr.mxu0 0.0
        %1085 = vmatpush1.msra.mxu0 0.0
        %1086 = vmatprep.subr.mxu0 0.0
        %1087 = vmatpush1.msra.mxu0 0.0
        %1088 = vmatprep.subr.mxu0 0.0
        %1089 = vmatpush1.msra.mxu0 0.0
        %1090 = vmatprep.subr.mxu0 0.0
        %1091 = vmatpush1.msra.mxu0 %v815
        %1092 = vmatprep.subr.mxu0 0.0
        %1093 = vmatpush2.msra.mxu0 0.0
        %1094 = vmatprep.subr.mxu0 0.0
        %1095 = vmatpush2.msra.mxu0 0.0
        %1096 = vmatprep.subr.mxu0 0.0
        %1097 = vmatpush2.msra.mxu0 0.0
        %1098 = vmatprep.subr.mxu0 0.0
        %1099 = vmatpush2.msra.mxu0 0.0
        %1100 = vmatprep.subr.mxu0 0.0
        %1101 = vmatpush2.msra.mxu0 0.0
        %1102 = vmatprep.subr.mxu0 0.0
        %1103 = vmatpush2.msra.mxu0 0.0
        %1104 = vmatprep.subr.mxu0 0.0
        %1105 = vmatpush2.msra.mxu0 0.0
        %1106 = vmatprep.subr.mxu0 0.0
        %1107 = vmatpush2.msra.mxu0 0.0
        %1108 = vmatprep.subr.mxu0 0.0
        %1109 = vmatpush2.msra.mxu0 0.0
        %1110 = vmatprep.subr.mxu0 0.0
        %1111 = vmatpush2.msra.mxu0 0.0
        %1112 = vmatprep.subr.mxu0 0.0
        %1113 = vmatpush2.msra.mxu0 0.0
        %1114 = vmatprep.subr.mxu0 0.0
        %1115 = vmatpush2.msra.mxu0 0.0
        %1116 = vmatprep.subr.mxu0 0.0
        %1117 = vmatpush2.msra.mxu0 0.0
        %1118 = vmatprep.subr.mxu0 0.0
        %1119 = vmatpush2.msra.mxu0 0.0
        %1120 = vmatprep.subr.mxu0 0.0
        %1121 = vmatpush2.msra.mxu0 0.0
        %1122 = vmatprep.subr.mxu0 0.0
        %1123 = vmatpush2.msra.mxu0 0.0
        %1124 = vmatprep.mubr.f32.mxu0 0.0
        %1125 = vmatmul.mubr.f32.gmra.mxu0 %v1058
        %v1126 = vpop.f32.mrf.mxu0
        %v1127 = vadd.f32 %v1054, %v1126
        %v1128 = vpop.f32.mrf.mxu0
        %1129 = vdwg.mxu0
        %1130 = vrot.lane.b32.xlu0 %v639, 112
        %v1131 = vpop.permute.xlu0 %1130
        %1132 = vrot.lane.b32.xlu0 %v639, 80
        %v1133 = vpop.permute.xlu0 %1132
        %v1134 = vsel %vm645, %v1131, 0
        %v1136 = vsel %vm645, %v1133, 0
        %1138 = vmatprep.subr.mxu0 0.0
        %1139 = vmatpush1.xpose.msra.mxu0 0.0
        %1140 = vmatprep.subr.mxu0 0.0
        %1141 = vmatpush1.xpose.msra.mxu0 0.0
        %1142 = vmatprep.subr.mxu0 0.0
        %1143 = vmatpush1.xpose.msra.mxu0 0.0
        %1144 = vmatprep.subr.mxu0 0.0
        %1145 = vmatpush1.xpose.msra.mxu0 0.0
        %1146 = vmatprep.subr.mxu0 0.0
        %1147 = vmatpush1.xpose.msra.mxu0 0.0
        %1148 = vmatprep.subr.mxu0 0.0
        %1149 = vmatpush1.xpose.msra.mxu0 0.0
        %1150 = vmatprep.subr.mxu0 0.0
        %1151 = vmatpush1.xpose.msra.mxu0 0.0
        %1152 = vmatprep.subr.mxu0 0.0
        %1153 = vmatpush1.xpose.msra.mxu0 0.0
        %1154 = vmatprep.subr.mxu0 0.0
        %1155 = vmatpush1.xpose.msra.mxu0 0.0
        %1156 = vmatprep.subr.mxu0 0.0
        %1157 = vmatpush1.xpose.msra.mxu0 0.0
        %1158 = vmatprep.subr.mxu0 0.0
        %1159 = vmatpush1.xpose.msra.mxu0 0.0
        %1160 = vmatprep.subr.mxu0 0.0
        %1161 = vmatpush1.xpose.msra.mxu0 0.0
        %1162 = vmatprep.subr.mxu0 0.0
        %1163 = vmatpush1.xpose.msra.mxu0 0.0
        %1164 = vmatprep.subr.mxu0 0.0
        %1165 = vmatpush1.xpose.msra.mxu0 0.0
        %1166 = vmatprep.subr.mxu0 0.0
        %1167 = vmatpush1.xpose.msra.mxu0 0.0
        %1168 = vmatprep.subr.mxu0 0.0
        %1169 = vmatpush1.xpose.msra.mxu0 %v1136
        %1170 = vmatprep.subr.mxu0 0.0
        %1171 = vmatpush2.xpose.msra.mxu0 0.0
        %1172 = vmatprep.subr.mxu0 0.0
        %1173 = vmatpush2.xpose.msra.mxu0 0.0
        %1174 = vmatprep.subr.mxu0 0.0
        %1175 = vmatpush2.xpose.msra.mxu0 0.0
        %1176 = vmatprep.subr.mxu0 0.0
        %1177 = vmatpush2.xpose.msra.mxu0 0.0
        %1178 = vmatprep.subr.mxu0 0.0
        %1179 = vmatpush2.xpose.msra.mxu0 0.0
        %1180 = vmatprep.subr.mxu0 0.0
        %1181 = vmatpush2.xpose.msra.mxu0 0.0
        %1182 = vmatprep.subr.mxu0 0.0
        %1183 = vmatpush2.xpose.msra.mxu0 0.0
        %1184 = vmatprep.subr.mxu0 0.0
        %1185 = vmatpush2.xpose.msra.mxu0 0.0
        %1186 = vmatprep.subr.mxu0 0.0
        %1187 = vmatpush2.xpose.msra.mxu0 0.0
        %1188 = vmatprep.subr.mxu0 0.0
        %1189 = vmatpush2.xpose.msra.mxu0 0.0
        %1190 = vmatprep.subr.mxu0 0.0
        %1191 = vmatpush2.xpose.msra.mxu0 0.0
        %1192 = vmatprep.subr.mxu0 0.0
        %1193 = vmatpush2.xpose.msra.mxu0 0.0
        %1194 = vmatprep.subr.mxu0 0.0
        %1195 = vmatpush2.xpose.msra.mxu0 0.0
        %1196 = vmatprep.subr.mxu0 0.0
        %1197 = vmatpush2.xpose.msra.mxu0 0.0
        %1198 = vmatprep.subr.mxu0 0.0
        %1199 = vmatpush2.xpose.msra.mxu0 0.0
        %1200 = vmatprep.subr.mxu0 0.0
        %1201 = vmatpush2.xpose.msra.mxu0 0.0
        %1202 = vmatprep.mubr.f32.mxu0 0.0
        %1203 = vmatmul.mubr.f32.gmra.mxu0 %v1134
        %v1204 = vpop.f32.mrf.mxu0
        %v1205 = vadd.f32 0.0, %v1204
        %v1206 = vpop.f32.mrf.mxu0
        %1207 = vdwg.mxu0
        %v1208 = vmul.f32 %v1205, 0.35355338
        %v1209 = vadd.f32 %v1208, %v725
        %v1210 = vsel %vm645, %v1209, -inf
        %1211 = vmax.xlane.f32.xlu0 %v1210
        %v1212 = vpop.xlane.xlu0 %1211
        %v1213 = vsub.f32 %v1209, %v1212
        %v1214 = vmul.f32 %v1213, 1.442695
        %v1215 = vpow.pop %v1214
        %v1216 = vsel %vm645, %v1215, 0.0
        %1217 = vadd.xlane.f32.xlu0 %v1216
        %v1218 = vpop.xlane.xlu0 %1217
        %v1219 = vrcp.pop %v1218
        %v1220 = vmul.f32 %v1215, %v1219
        %1221 = vrot.lane.b32.xlu0 %v639, 48
        %v1222 = vpop.permute.xlu0 %1221
        %v1225 = vsel %vm645, %v1220, 0
        %1227 = vmatprep.subr.mxu0 0.0
        %1228 = vmatpush1.msra.mxu0 0.0
        %1229 = vmatprep.subr.mxu0 0.0
        %1230 = vmatpush1.msra.mxu0 0.0
        %1231 = vmatprep.subr.mxu0 0.0
        %1232 = vmatpush1.msra.mxu0 0.0
        %1233 = vmatprep.subr.mxu0 0.0
        %1234 = vmatpush1.msra.mxu0 0.0
        %1235 = vmatprep.subr.mxu0 0.0
        %1236 = vmatpush1.msra.mxu0 0.0
        %1237 = vmatprep.subr.mxu0 0.0
        %1238 = vmatpush1.msra.mxu0 0.0
        %1239 = vmatprep.subr.mxu0 0.0
        %1240 = vmatpush1.msra.mxu0 0.0
        %1241 = vmatprep.subr.mxu0 0.0
        %1242 = vmatpush1.msra.mxu0 0.0
        %1243 = vmatprep.subr.mxu0 0.0
        %1244 = vmatpush1.msra.mxu0 0.0
        %1245 = vmatprep.subr.mxu0 0.0
        %1246 = vmatpush1.msra.mxu0 0.0
        %1247 = vmatprep.subr.mxu0 0.0
        %1248 = vmatpush1.msra.mxu0 0.0
        %1249 = vmatprep.subr.mxu0 0.0
        %1250 = vmatpush1.msra.mxu0 0.0
        %1251 = vmatprep.subr.mxu0 0.0
        %1252 = vmatpush1.msra.mxu0 0.0
        %1253 = vmatprep.subr.mxu0 0.0
        %1254 = vmatpush1.msra.mxu0 0.0
        %1255 = vmatprep.subr.mxu0 0.0
        %1256 = vmatpush1.msra.mxu0 0.0
        %1257 = vmatprep.subr.mxu0 0.0
        %1258 = vmatpush1.msra.mxu0 %v1222
        %1259 = vmatprep.subr.mxu0 0.0
        %1260 = vmatpush2.msra.mxu0 0.0
        %1261 = vmatprep.subr.mxu0 0.0
        %1262 = vmatpush2.msra.mxu0 0.0
        %1263 = vmatprep.subr.mxu0 0.0
        %1264 = vmatpush2.msra.mxu0 0.0
        %1265 = vmatprep.subr.mxu0 0.0
        %1266 = vmatpush2.msra.mxu0 0.0
        %1267 = vmatprep.subr.mxu0 0.0
        %1268 = vmatpush2.msra.mxu0 0.0
        %1269 = vmatprep.subr.mxu0 0.0
        %1270 = vmatpush2.msra.mxu0 0.0
        %1271 = vmatprep.subr.mxu0 0.0
        %1272 = vmatpush2.msra.mxu0 0.0
        %1273 = vmatprep.subr.mxu0 0.0
        %1274 = vmatpush2.msra.mxu0 0.0
        %1275 = vmatprep.subr.mxu0 0.0
        %1276 = vmatpush2.msra.mxu0 0.0
        %1277 = vmatprep.subr.mxu0 0.0
        %1278 = vmatpush2.msra.mxu0 0.0
        %1279 = vmatprep.subr.mxu0 0.0
        %1280 = vmatpush2.msra.mxu0 0.0
        %1281 = vmatprep.subr.mxu0 0.0
        %1282 = vmatpush2.msra.mxu0 0.0
        %1283 = vmatprep.subr.mxu0 0.0
        %1284 = vmatpush2.msra.mxu0 0.0
        %1285 = vmatprep.subr.mxu0 0.0
        %1286 = vmatpush2.msra.mxu0 0.0
        %1287 = vmatprep.subr.mxu0 0.0
        %1288 = vmatpush2.msra.mxu0 0.0
        %1289 = vmatprep.subr.mxu0 0.0
        %1290 = vmatpush2.msra.mxu0 0.0
        %1291 = vmatprep.mubr.f32.mxu0 0.0
        %1292 = vmatmul.mubr.f32.gmra.mxu0 %v1225
        %v1293 = vpop.f32.mrf.mxu0
        %v1294 = vadd.f32 0.0, %v1293
        %v1295 = vpop.f32.mrf.mxu0
        %1296 = vdwg.mxu0
        %v1297 = vld [vmem:[%s4 + $0x10] sm:$0xff]
        %v1299 = vsel %vm645, %v1294, 0
        %1301 = vmatprep.subr.mxu0 0.0
        %1302 = vmatpush1.msra.mxu0 0.0
        %1303 = vmatprep.subr.mxu0 0.0
        %1304 = vmatpush1.msra.mxu0 0.0
        %1305 = vmatprep.subr.mxu0 0.0
        %1306 = vmatpush1.msra.mxu0 0.0
        %1307 = vmatprep.subr.mxu0 0.0
        %1308 = vmatpush1.msra.mxu0 0.0
        %1309 = vmatprep.subr.mxu0 0.0
        %1310 = vmatpush1.msra.mxu0 0.0
        %1311 = vmatprep.subr.mxu0 0.0
        %1312 = vmatpush1.msra.mxu0 0.0
        %1313 = vmatprep.subr.mxu0 0.0
        %1314 = vmatpush1.msra.mxu0 0.0
        %1315 = vmatprep.subr.mxu0 0.0
        %1316 = vmatpush1.msra.mxu0 0.0
        %1317 = vmatprep.subr.mxu0 0.0
        %1318 = vmatpush1.msra.mxu0 0.0
        %1319 = vmatprep.subr.mxu0 0.0
        %1320 = vmatpush1.msra.mxu0 0.0
        %1321 = vmatprep.subr.mxu0 0.0
        %1322 = vmatpush1.msra.mxu0 0.0
        %1323 = vmatprep.subr.mxu0 0.0
        %1324 = vmatpush1.msra.mxu0 0.0
        %1325 = vmatprep.subr.mxu0 0.0
        %1326 = vmatpush1.msra.mxu0 0.0
        %1327 = vmatprep.subr.mxu0 0.0
        %1328 = vmatpush1.msra.mxu0 0.0
        %1329 = vmatprep.subr.mxu0 0.0
        %1330 = vmatpush1.msra.mxu0 0.0
        %1331 = vmatprep.subr.mxu0 0.0
        %1332 = vmatpush1.msra.mxu0 %v1297
        %1333 = vmatprep.subr.mxu0 0.0
        %1334 = vmatpush2.msra.mxu0 0.0
        %1335 = vmatprep.subr.mxu0 0.0
        %1336 = vmatpush2.msra.mxu0 0.0
        %1337 = vmatprep.subr.mxu0 0.0
        %1338 = vmatpush2.msra.mxu0 0.0
        %1339 = vmatprep.subr.mxu0 0.0
        %1340 = vmatpush2.msra.mxu0 0.0
        %1341 = vmatprep.subr.mxu0 0.0
        %1342 = vmatpush2.msra.mxu0 0.0
        %1343 = vmatprep.subr.mxu0 0.0
        %1344 = vmatpush2.msra.mxu0 0.0
        %1345 = vmatprep.subr.mxu0 0.0
        %1346 = vmatpush2.msra.mxu0 0.0
        %1347 = vmatprep.subr.mxu0 0.0
        %1348 = vmatpush2.msra.mxu0 0.0
        %1349 = vmatprep.subr.mxu0 0.0
        %1350 = vmatpush2.msra.mxu0 0.0
        %1351 = vmatprep.subr.mxu0 0.0
        %1352 = vmatpush2.msra.mxu0 0.0
        %1353 = vmatprep.subr.mxu0 0.0
        %1354 = vmatpush2.msra.mxu0 0.0
        %1355 = vmatprep.subr.mxu0 0.0
        %1356 = vmatpush2.msra.mxu0 0.0
        %1357 = vmatprep.subr.mxu0 0.0
        %1358 = vmatpush2.msra.mxu0 0.0
        %1359 = vmatprep.subr.mxu0 0.0
        %1360 = vmatpush2.msra.mxu0 0.0
        %1361 = vmatprep.subr.mxu0 0.0
        %1362 = vmatpush2.msra.mxu0 0.0
        %1363 = vmatprep.subr.mxu0 0.0
        %1364 = vmatpush2.msra.mxu0 0.0
        %1365 = vmatprep.mubr.f32.mxu0 0.0
        %1366 = vmatmul.mubr.f32.gmra.mxu0 %v1299
        %v1367 = vpop.f32.mrf.mxu0
        %v1368 = vadd.f32 0.0, %v1367
        %v1369 = vpop.f32.mrf.mxu0
        %1370 = vdwg.mxu0
        %v1371 = vadd.f32 %v1127, %v1368
        %1372 = vrot.lane.b32.xlu0 %v639, 104
        %v1373 = vpop.permute.xlu0 %1372
        %1374 = vrot.lane.b32.xlu0 %v639, 72
        %v1375 = vpop.permute.xlu0 %1374
        %v1376 = vsel %vm645, %v1373, 0
        %v1378 = vsel %vm645, %v1375, 0
        %1380 = vmatprep.subr.mxu0 0.0
        %1381 = vmatpush1.xpose.msra.mxu0 0.0
        %1382 = vmatprep.subr.mxu0 0.0
        %1383 = vmatpush1.xpose.msra.mxu0 0.0
        %1384 = vmatprep.subr.mxu0 0.0
        %1385 = vmatpush1.xpose.msra.mxu0 0.0
        %1386 = vmatprep.subr.mxu0 0.0
        %1387 = vmatpush1.xpose.msra.mxu0 0.0
        %1388 = vmatprep.subr.mxu0 0.0
        %1389 = vmatpush1.xpose.msra.mxu0 0.0
        %1390 = vmatprep.subr.mxu0 0.0
        %1391 = vmatpush1.xpose.msra.mxu0 0.0
        %1392 = vmatprep.subr.mxu0 0.0
        %1393 = vmatpush1.xpose.msra.mxu0 0.0
        %1394 = vmatprep.subr.mxu0 0.0
        %1395 = vmatpush1.xpose.msra.mxu0 0.0
        %1396 = vmatprep.subr.mxu0 0.0
        %1397 = vmatpush1.xpose.msra.mxu0 0.0
        %1398 = vmatprep.subr.mxu0 0.0
        %1399 = vmatpush1.xpose.msra.mxu0 0.0
        %1400 = vmatprep.subr.mxu0 0.0
        %1401 = vmatpush1.xpose.msra.mxu0 0.0
        %1402 = vmatprep.subr.mxu0 0.0
        %1403 = vmatpush1.xpose.msra.mxu0 0.0
        %1404 = vmatprep.subr.mxu0 0.0
        %1405 = vmatpush1.xpose.msra.mxu0 0.0
        %1406 = vmatprep.subr.mxu0 0.0
        %1407 = vmatpush1.xpose.msra.mxu0 0.0
        %1408 = vmatprep.subr.mxu0 0.0
        %1409 = vmatpush1.xpose.msra.mxu0 0.0
        %1410 = vmatprep.subr.mxu0 0.0
        %1411 = vmatpush1.xpose.msra.mxu0 %v1378
        %1412 = vmatprep.subr.mxu0 0.0
        %1413 = vmatpush2.xpose.msra.mxu0 0.0
        %1414 = vmatprep.subr.mxu0 0.0
        %1415 = vmatpush2.xpose.msra.mxu0 0.0
        %1416 = vmatprep.subr.mxu0 0.0
        %1417 = vmatpush2.xpose.msra.mxu0 0.0
        %1418 = vmatprep.subr.mxu0 0.0
        %1419 = vmatpush2.xpose.msra.mxu0 0.0
        %1420 = vmatprep.subr.mxu0 0.0
        %1421 = vmatpush2.xpose.msra.mxu0 0.0
        %1422 = vmatprep.subr.mxu0 0.0
        %1423 = vmatpush2.xpose.msra.mxu0 0.0
        %1424 = vmatprep.subr.mxu0 0.0
        %1425 = vmatpush2.xpose.msra.mxu0 0.0
        %1426 = vmatprep.subr.mxu0 0.0
        %1427 = vmatpush2.xpose.msra.mxu0 0.0
        %1428 = vmatprep.subr.mxu0 0.0
        %1429 = vmatpush2.xpose.msra.mxu0 0.0
        %1430 = vmatprep.subr.mxu0 0.0
        %1431 = vmatpush2.xpose.msra.mxu0 0.0
        %1432 = vmatprep.subr.mxu0 0.0
        %1433 = vmatpush2.xpose.msra.mxu0 0.0
        %1434 = vmatprep.subr.mxu0 0.0
        %1435 = vmatpush2.xpose.msra.mxu0 0.0
        %1436 = vmatprep.subr.mxu0 0.0
        %1437 = vmatpush2.xpose.msra.mxu0 0.0
        %1438 = vmatprep.subr.mxu0 0.0
        %1439 = vmatpush2.xpose.msra.mxu0 0.0
        %1440 = vmatprep.subr.mxu0 0.0
        %1441 = vmatpush2.xpose.msra.mxu0 0.0
        %1442 = vmatprep.subr.mxu0 0.0
        %1443 = vmatpush2.xpose.msra.mxu0 0.0
        %1444 = vmatprep.mubr.f32.mxu0 0.0
        %1445 = vmatmul.mubr.f32.gmra.mxu0 %v1376
        %v1446 = vpop.f32.mrf.mxu0
        %v1447 = vadd.f32 0.0, %v1446
        %v1448 = vpop.f32.mrf.mxu0
        %1449 = vdwg.mxu0
        %v1450 = vmul.f32 %v1447, 0.35355338
        %v1451 = vadd.f32 %v1450, %v725
        %v1452 = vsel %vm645, %v1451, -inf
        %1453 = vmax.xlane.f32.xlu0 %v1452
        %v1454 = vpop.xlane.xlu0 %1453
        %v1455 = vsub.f32 %v1451, %v1454
        %v1456 = vmul.f32 %v1455, 1.442695
        %v1457 = vpow.pop %v1456
        %v1458 = vsel %vm645, %v1457, 0.0
        %1459 = vadd.xlane.f32.xlu0 %v1458
        %v1460 = vpop.xlane.xlu0 %1459
        %v1461 = vrcp.pop %v1460
        %v1462 = vmul.f32 %v1457, %v1461
        %1463 = vrot.lane.b32.xlu0 %v639, 40
        %v1464 = vpop.permute.xlu0 %1463
        %v1467 = vsel %vm645, %v1462, 0
        %1469 = vmatprep.subr.mxu0 0.0
        %1470 = vmatpush1.msra.mxu0 0.0
        %1471 = vmatprep.subr.mxu0 0.0
        %1472 = vmatpush1.msra.mxu0 0.0
        %1473 = vmatprep.subr.mxu0 0.0
        %1474 = vmatpush1.msra.mxu0 0.0
        %1475 = vmatprep.subr.mxu0 0.0
        %1476 = vmatpush1.msra.mxu0 0.0
        %1477 = vmatprep.subr.mxu0 0.0
        %1478 = vmatpush1.msra.mxu0 0.0
        %1479 = vmatprep.subr.mxu0 0.0
        %1480 = vmatpush1.msra.mxu0 0.0
        %1481 = vmatprep.subr.mxu0 0.0
        %1482 = vmatpush1.msra.mxu0 0.0
        %1483 = vmatprep.subr.mxu0 0.0
        %1484 = vmatpush1.msra.mxu0 0.0
        %1485 = vmatprep.subr.mxu0 0.0
        %1486 = vmatpush1.msra.mxu0 0.0
        %1487 = vmatprep.subr.mxu0 0.0
        %1488 = vmatpush1.msra.mxu0 0.0
        %1489 = vmatprep.subr.mxu0 0.0
        %1490 = vmatpush1.msra.mxu0 0.0
        %1491 = vmatprep.subr.mxu0 0.0
        %1492 = vmatpush1.msra.mxu0 0.0
        %1493 = vmatprep.subr.mxu0 0.0
        %1494 = vmatpush1.msra.mxu0 0.0
        %1495 = vmatprep.subr.mxu0 0.0
        %1496 = vmatpush1.msra.mxu0 0.0
        %1497 = vmatprep.subr.mxu0 0.0
        %1498 = vmatpush1.msra.mxu0 0.0
        %1499 = vmatprep.subr.mxu0 0.0
        %1500 = vmatpush1.msra.mxu0 %v1464
        %1501 = vmatprep.subr.mxu0 0.0
        %1502 = vmatpush2.msra.mxu0 0.0
        %1503 = vmatprep.subr.mxu0 0.0
        %1504 = vmatpush2.msra.mxu0 0.0
        %1505 = vmatprep.subr.mxu0 0.0
        %1506 = vmatpush2.msra.mxu0 0.0
        %1507 = vmatprep.subr.mxu0 0.0
        %1508 = vmatpush2.msra.mxu0 0.0
        %1509 = vmatprep.subr.mxu0 0.0
        %1510 = vmatpush2.msra.mxu0 0.0
        %1511 = vmatprep.subr.mxu0 0.0
        %1512 = vmatpush2.msra.mxu0 0.0
        %1513 = vmatprep.subr.mxu0 0.0
        %1514 = vmatpush2.msra.mxu0 0.0
        %1515 = vmatprep.subr.mxu0 0.0
        %1516 = vmatpush2.msra.mxu0 0.0
        %1517 = vmatprep.subr.mxu0 0.0
        %1518 = vmatpush2.msra.mxu0 0.0
        %1519 = vmatprep.subr.mxu0 0.0
        %1520 = vmatpush2.msra.mxu0 0.0
        %1521 = vmatprep.subr.mxu0 0.0
        %1522 = vmatpush2.msra.mxu0 0.0
        %1523 = vmatprep.subr.mxu0 0.0
        %1524 = vmatpush2.msra.mxu0 0.0
        %1525 = vmatprep.subr.mxu0 0.0
        %1526 = vmatpush2.msra.mxu0 0.0
        %1527 = vmatprep.subr.mxu0 0.0
        %1528 = vmatpush2.msra.mxu0 0.0
        %1529 = vmatprep.subr.mxu0 0.0
        %1530 = vmatpush2.msra.mxu0 0.0
        %1531 = vmatprep.subr.mxu0 0.0
        %1532 = vmatpush2.msra.mxu0 0.0
        %1533 = vmatprep.mubr.f32.mxu0 0.0
        %1534 = vmatmul.mubr.f32.gmra.mxu0 %v1467
        %v1535 = vpop.f32.mrf.mxu0
        %v1536 = vadd.f32 0.0, %v1535
        %v1537 = vpop.f32.mrf.mxu0
        %1538 = vdwg.mxu0
        %v1539 = vld [vmem:[%s4 + $0x18] sm:$0xff]
        %v1541 = vsel %vm645, %v1536, 0
        %1543 = vmatprep.subr.mxu0 0.0
        %1544 = vmatpush1.msra.mxu0 0.0
        %1545 = vmatprep.subr.mxu0 0.0
        %1546 = vmatpush1.msra.mxu0 0.0
        %1547 = vmatprep.subr.mxu0 0.0
        %1548 = vmatpush1.msra.mxu0 0.0
        %1549 = vmatprep.subr.mxu0 0.0
        %1550 = vmatpush1.msra.mxu0 0.0
        %1551 = vmatprep.subr.mxu0 0.0
        %1552 = vmatpush1.msra.mxu0 0.0
        %1553 = vmatprep.subr.mxu0 0.0
        %1554 = vmatpush1.msra.mxu0 0.0
        %1555 = vmatprep.subr.mxu0 0.0
        %1556 = vmatpush1.msra.mxu0 0.0
        %1557 = vmatprep.subr.mxu0 0.0
        %1558 = vmatpush1.msra.mxu0 0.0
        %1559 = vmatprep.subr.mxu0 0.0
        %1560 = vmatpush1.msra.mxu0 0.0
        %1561 = vmatprep.subr.mxu0 0.0
        %1562 = vmatpush1.msra.mxu0 0.0
        %1563 = vmatprep.subr.mxu0 0.0
        %1564 = vmatpush1.msra.mxu0 0.0
        %1565 = vmatprep.subr.mxu0 0.0
        %1566 = vmatpush1.msra.mxu0 0.0
        %1567 = vmatprep.subr.mxu0 0.0
        %1568 = vmatpush1.msra.mxu0 0.0
        %1569 = vmatprep.subr.mxu0 0.0
        %1570 = vmatpush1.msra.mxu0 0.0
        %1571 = vmatprep.subr.mxu0 0.0
        %1572 = vmatpush1.msra.mxu0 0.0
        %1573 = vmatprep.subr.mxu0 0.0
        %1574 = vmatpush1.msra.mxu0 %v1539
        %1575 = vmatprep.subr.mxu0 0.0
        %1576 = vmatpush2.msra.mxu0 0.0
        %1577 = vmatprep.subr.mxu0 0.0
        %1578 = vmatpush2.msra.mxu0 0.0
        %1579 = vmatprep.subr.mxu0 0.0
        %1580 = vmatpush2.msra.mxu0 0.0
        %1581 = vmatprep.subr.mxu0 0.0
        %1582 = vmatpush2.msra.mxu0 0.0
        %1583 = vmatprep.subr.mxu0 0.0
        %1584 = vmatpush2.msra.mxu0 0.0
        %1585 = vmatprep.subr.mxu0 0.0
        %1586 = vmatpush2.msra.mxu0 0.0
        %1587 = vmatprep.subr.mxu0 0.0
        %1588 = vmatpush2.msra.mxu0 0.0
        %1589 = vmatprep.subr.mxu0 0.0
        %1590 = vmatpush2.msra.mxu0 0.0
        %1591 = vmatprep.subr.mxu0 0.0
        %1592 = vmatpush2.msra.mxu0 0.0
        %1593 = vmatprep.subr.mxu0 0.0
        %1594 = vmatpush2.msra.mxu0 0.0
        %1595 = vmatprep.subr.mxu0 0.0
        %1596 = vmatpush2.msra.mxu0 0.0
        %1597 = vmatprep.subr.mxu0 0.0
        %1598 = vmatpush2.msra.mxu0 0.0
        %1599 = vmatprep.subr.mxu0 0.0
        %1600 = vmatpush2.msra.mxu0 0.0
        %1601 = vmatprep.subr.mxu0 0.0
        %1602 = vmatpush2.msra.mxu0 0.0
        %1603 = vmatprep.subr.mxu0 0.0
        %1604 = vmatpush2.msra.mxu0 0.0
        %1605 = vmatprep.subr.mxu0 0.0
        %1606 = vmatpush2.msra.mxu0 0.0
        %1607 = vmatprep.mubr.f32.mxu0 0.0
        %1608 = vmatmul.mubr.f32.gmra.mxu0 %v1541
        %v1609 = vpop.f32.mrf.mxu0
        %v1610 = vadd.f32 0.0, %v1609
        %v1611 = vpop.f32.mrf.mxu0
        %1612 = vdwg.mxu0
        %v1613 = vadd.f32 %v1371, %v1610
        %v1614 = vadd.f32 %v517, %v1613
        %v1615 = vld [vmem:[%s5] sm:$0x1]
        %v1617 = vlaneseq
        %v1618 = vshrl.u32 %v1617, 7
        %v1619 = vsub.s32 0, %v1618
        %v1620 = vrot.slane %v1615, %v1619
        %v1622 = vadd.f32 %v1614, %v1620
        %v1623 = vld [vmem:[%s8] sm:$0x1]
        %v1624 = vld [vmem:[%s9] sm:$0x1]
        %v1625 = vsel %vm521, %v1622, 0.0
        %1626 = vadd.xlane.f32.xlu0 %v1625
        %v1627 = vpop.xlane.xlu0 %1626
        %v1628 = vmul.f32 %v1627, %v525
        %v1629 = vsub.f32 %v1622, %v1628
        %v1630 = vmul.f32 %v1629, %v1629
        %v1631 = vsel %vm521, %v1630, 0.0
        %1632 = vadd.xlane.f32.xlu0 %v1631
        %v1633 = vpop.xlane.xlu0 %1632
        %v1634 = vmul.f32 %v1633, %v532
        %v1635 = vrsqrt.pop %v1634
        %v1636 = vmul.f32 %v1634, %v1635
        %vm1637 = vcmp.eq.f32.partialorder %v1634, inf
        %v1638 = vsel %vm1637, %v1634, %v1636
        %vm1639 = vcmp.eq.f32.partialorder %v1634, 0.0
        %v1640 = vand.u32 %v1634, 2147483648
        %v1641 = vsel %vm1639, %v1640, %v1638
        %v1643 = vlaneseq
        %v1644 = vshrl.u32 %v1643, 7
        %v1645 = vsub.s32 0, %v1644
        %v1646 = vrot.slane %v1623, %v1645
        %v1648 = vmul.f32 %v1646, %v1629
        %v1649 = vadd.f32 %v1641, 1e-06
        %v1650 = vrcp.pop %v1649
        %v1651 = vmul.f32 %v1648, %v1650
        %v1653 = vlaneseq
        %v1654 = vshrl.u32 %v1653, 7
        %v1655 = vsub.s32 0, %v1654
        %v1656 = vrot.slane %v1624, %v1655
        %v1658 = vadd.f32 %v1651, %v1656
        %v1659 = vld [vmem:[%s10] sm:$0xff]
        %v1660 = vld [vmem:[%s10 + $0x8] sm:$0xff]
        %v1661 = vld [vmem:[%s10 + $0x10] sm:$0xff]
        %v1662 = vld [vmem:[%s10 + $0x18] sm:$0xff]
        %v1663 = vld [vmem:[%s11] sm:$0x1]
        %v1665 = vlaneseq
        %v1666 = vshrl.u32 %v1665, 7
        %v1667 = vsub.s32 0, %v1666
        %v1668 = vrot.slane %v1663, %v1667
        %v1671 = vsel %vm521, %v1658, 0
        %1673 = vmatprep.subr.mxu0 0.0
        %1674 = vmatpush1.msra.mxu0 0.0
        %1675 = vmatprep.subr.mxu0 0.0
        %1676 = vmatpush1.msra.mxu0 0.0
        %1677 = vmatprep.subr.mxu0 0.0
        %1678 = vmatpush1.msra.mxu0 0.0
        %1679 = vmatprep.subr.mxu0 0.0
        %1680 = vmatpush1.msra.mxu0 0.0
        %1681 = vmatprep.subr.mxu0 0.0
        %1682 = vmatpush1.msra.mxu0 0.0
        %1683 = vmatprep.subr.mxu0 0.0
        %1684 = vmatpush1.msra.mxu0 0.0
        %1685 = vmatprep.subr.mxu0 0.0
        %1686 = vmatpush1.msra.mxu0 0.0
        %1687 = vmatprep.subr.mxu0 0.0
        %1688 = vmatpush1.msra.mxu0 0.0
        %1689 = vmatprep.subr.mxu0 0.0
        %1690 = vmatpush1.msra.mxu0 0.0
        %1691 = vmatprep.subr.mxu0 0.0
        %1692 = vmatpush1.msra.mxu0 0.0
        %1693 = vmatprep.subr.mxu0 0.0
        %1694 = vmatpush1.msra.mxu0 0.0
        %1695 = vmatprep.subr.mxu0 0.0
        %1696 = vmatpush1.msra.mxu0 0.0
        %1697 = vmatprep.subr.mxu0 0.0
        %1698 = vmatpush1.msra.mxu0 %v1662
        %1699 = vmatprep.subr.mxu0 0.0
        %1700 = vmatpush1.msra.mxu0 %v1661
        %1701 = vmatprep.subr.mxu0 0.0
        %1702 = vmatpush1.msra.mxu0 %v1660
        %1703 = vmatprep.subr.mxu0 0.0
        %1704 = vmatpush1.msra.mxu0 %v1659
        %1705 = vmatprep.subr.mxu0 0.0
        %1706 = vmatpush2.msra.mxu0 0.0
        %1707 = vmatprep.subr.mxu0 0.0
        %1708 = vmatpush2.msra.mxu0 0.0
        %1709 = vmatprep.subr.mxu0 0.0
        %1710 = vmatpush2.msra.mxu0 0.0
        %1711 = vmatprep.subr.mxu0 0.0
        %1712 = vmatpush2.msra.mxu0 0.0
        %1713 = vmatprep.subr.mxu0 0.0
        %1714 = vmatpush2.msra.mxu0 0.0
        %1715 = vmatprep.subr.mxu0 0.0
        %1716 = vmatpush2.msra.mxu0 0.0
        %1717 = vmatprep.subr.mxu0 0.0
        %1718 = vmatpush2.msra.mxu0 0.0
        %1719 = vmatprep.subr.mxu0 0.0
        %1720 = vmatpush2.msra.mxu0 0.0
        %1721 = vmatprep.subr.mxu0 0.0
        %1722 = vmatpush2.msra.mxu0 0.0
        %1723 = vmatprep.subr.mxu0 0.0
        %1724 = vmatpush2.msra.mxu0 0.0
        %1725 = vmatprep.subr.mxu0 0.0
        %1726 = vmatpush2.msra.mxu0 0.0
        %1727 = vmatprep.subr.mxu0 0.0
        %1728 = vmatpush2.msra.mxu0 0.0
        %1729 = vmatprep.subr.mxu0 0.0
        %1730 = vmatpush2.msra.mxu0 0.0
        %1731 = vmatprep.subr.mxu0 0.0
        %1732 = vmatpush2.msra.mxu0 0.0
        %1733 = vmatprep.subr.mxu0 0.0
        %1734 = vmatpush2.msra.mxu0 0.0
        %1735 = vmatprep.subr.mxu0 0.0
        %1736 = vmatpush2.msra.mxu0 0.0
        %1737 = vmatprep.mubr.f32.mxu0 0.0
        %1738 = vmatmul.mubr.f32.gmra.mxu0 %v1671
        %v1739 = vpop.f32.mrf.mxu0
        %v1740 = vadd.f32 %v1668, %v1739
        %v1741 = vpop.f32.mrf.mxu0
        %1742 = vdwg.mxu0
        %v1743 = vmax.f32 %v1740, 0.0
        %v1744 = vld [vmem:[%s12] sm:$0xff]
        %v1745 = vld [vmem:[%s12 + $0x8] sm:$0xff]
        %v1746 = vld [vmem:[%s12 + $0x10] sm:$0xff]
        %v1747 = vld [vmem:[%s12 + $0x18] sm:$0xff]
        %v1748 = vld [vmem:[%s12 + $0x20] sm:$0xff]
        %v1749 = vld [vmem:[%s12 + $0x28] sm:$0xff]
        %v1750 = vld [vmem:[%s12 + $0x30] sm:$0xff]
        %v1751 = vld [vmem:[%s12 + $0x38] sm:$0xff]
        %v1752 = vld [vmem:[%s13] sm:$0x1]
        %v1754 = vlaneseq
        %v1755 = vshrl.u32 %v1754, 7
        %v1756 = vsub.s32 0, %v1755
        %v1757 = vrot.slane %v1752, %v1756
        %vm1759 = vcmask 523264
        %v1761 = vsel %vm1759, %v1743, 0
        %1763 = vmatprep.subr.mxu0 0.0
        %1764 = vmatpush1.msra.mxu0 0.0
        %1765 = vmatprep.subr.mxu0 0.0
        %1766 = vmatpush1.msra.mxu0 0.0
        %1767 = vmatprep.subr.mxu0 0.0
        %1768 = vmatpush1.msra.mxu0 0.0
        %1769 = vmatprep.subr.mxu0 0.0
        %1770 = vmatpush1.msra.mxu0 0.0
        %1771 = vmatprep.subr.mxu0 0.0
        %1772 = vmatpush1.msra.mxu0 0.0
        %1773 = vmatprep.subr.mxu0 0.0
        %1774 = vmatpush1.msra.mxu0 0.0
        %1775 = vmatprep.subr.mxu0 0.0
        %1776 = vmatpush1.msra.mxu0 0.0
        %1777 = vmatprep.subr.mxu0 0.0
        %1778 = vmatpush1.msra.mxu0 0.0
        %1779 = vmatprep.subr.mxu0 0.0
        %1780 = vmatpush1.msra.mxu0 %v1751
        %1781 = vmatprep.subr.mxu0 0.0
        %1782 = vmatpush1.msra.mxu0 %v1750
        %1783 = vmatprep.subr.mxu0 0.0
        %1784 = vmatpush1.msra.mxu0 %v1749
        %1785 = vmatprep.subr.mxu0 0.0
        %1786 = vmatpush1.msra.mxu0 %v1748
        %1787 = vmatprep.subr.mxu0 0.0
        %1788 = vmatpush1.msra.mxu0 %v1747
        %1789 = vmatprep.subr.mxu0 0.0
        %1790 = vmatpush1.msra.mxu0 %v1746
        %1791 = vmatprep.subr.mxu0 0.0
        %1792 = vmatpush1.msra.mxu0 %v1745
        %1793 = vmatprep.subr.mxu0 0.0
        %1794 = vmatpush1.msra.mxu0 %v1744
        %1795 = vmatprep.subr.mxu0 0.0
        %1796 = vmatpush2.msra.mxu0 0.0
        %1797 = vmatprep.subr.mxu0 0.0
        %1798 = vmatpush2.msra.mxu0 0.0
        %1799 = vmatprep.subr.mxu0 0.0
        %1800 = vmatpush2.msra.mxu0 0.0
        %1801 = vmatprep.subr.mxu0 0.0
        %1802 = vmatpush2.msra.mxu0 0.0
        %1803 = vmatprep.subr.mxu0 0.0
        %1804 = vmatpush2.msra.mxu0 0.0
        %1805 = vmatprep.subr.mxu0 0.0
        %1806 = vmatpush2.msra.mxu0 0.0
        %1807 = vmatprep.subr.mxu0 0.0
        %1808 = vmatpush2.msra.mxu0 0.0
        %1809 = vmatprep.subr.mxu0 0.0
        %1810 = vmatpush2.msra.mxu0 0.0
        %1811 = vmatprep.subr.mxu0 0.0
        %1812 = vmatpush2.msra.mxu0 0.0
        %1813 = vmatprep.subr.mxu0 0.0
        %1814 = vmatpush2.msra.mxu0 0.0
        %1815 = vmatprep.subr.mxu0 0.0
        %1816 = vmatpush2.msra.mxu0 0.0
        %1817 = vmatprep.subr.mxu0 0.0
        %1818 = vmatpush2.msra.mxu0 0.0
        %1819 = vmatprep.subr.mxu0 0.0
        %1820 = vmatpush2.msra.mxu0 0.0
        %1821 = vmatprep.subr.mxu0 0.0
        %1822 = vmatpush2.msra.mxu0 0.0
        %1823 = vmatprep.subr.mxu0 0.0
        %1824 = vmatpush2.msra.mxu0 0.0
        %1825 = vmatprep.subr.mxu0 0.0
        %1826 = vmatpush2.msra.mxu0 0.0
        %1827 = vmatprep.mubr.f32.mxu0 0.0
        %1828 = vmatmul.mubr.f32.gmra.mxu0 %v1761
        %v1829 = vpop.f32.mrf.mxu0
        %v1830 = vadd.f32 %v1757, %v1829
        %v1831 = vpop.f32.mrf.mxu0
        %1832 = vdwg.mxu0
        %v1833 = vadd.f32 %v1622, %v1830
        %1834 = vst.msk [vmem:[%s516] sm:$0xff] %vm521, %v1833
        %s1835 = sand.u32 %s346, 1
        %s1836 = scalar_lea.sflag [#allocation4], %s1835
        %s1837 = sand.u32 %s346, 1
        %s1838 = smul.addr %s1837, 8
        %s1839 = scalar_lea.vmem [#allocation7], %s1838
        // Predicated region
        $region85: #{tpu_custom_call.1} parent=75 // pred_check
          %p1840 = pneg %p356
        $region86: #{tpu_custom_call.1} parent=75 // pred_check_branch
          %1842 = sbr.rel (%p1840) target = $region88
        $region87: #{tpu_custom_call.1} parent=75 // pred_region
          %s1844 = ssub.s32 128, 128
          %1845 = vsyncadd %s1836, %s1844
          %s1846 = smul.addr %s34, 128
          %s1847 = scalar_lea.hbm %s14, %s1846
          %s1849 = sshll.u32 %s1839, 4
          %s1850 = int_to_ptr.vmem [resolvable:$true] %s1849
          %1852 = dma.vmem_to_hbm [thread:$0]  %s1850, 128, %s1847, %s1836
        $region88: #{tpu_custom_call.1} parent=75 // pred_fallthru
          _
      $region76: #{tpu_custom_call.1} parent=5 // pred_fallthru
        _
      %p1853 = scmp.le.s32.totalorder 2, %s29
      // Predicated region
      $region89: #{tpu_custom_call.1} parent=5 // pred_check
        %p1854 = pneg %p1853
      $region90: #{tpu_custom_call.1} parent=5 // pred_check_branch
        %1856 = sbr.rel (%p1854) target = $region92
      $region91: #{tpu_custom_call.1} parent=5 // pred_region
        %s1857 = ssub.s32 %s29, 2
        // Predicated region
        $region93: #{tpu_custom_call.1} parent=91 // pred_check
          %p1858 = pneg %p362
        $region94: #{tpu_custom_call.1} parent=91 // pred_check_branch
          %1860 = sbr.rel (%p1858) target = $region96
        $region95: #{tpu_custom_call.1} parent=91 // pred_region
          %s1861 = sand.u32 %s347, 1
          %s1862 = scalar_lea.sflag [#allocation4], %s1861
          %s1863 = sand.u32 %s347, 1
          %s1864 = smul.addr %s1863, 8
          %s1865 = scalar_lea.vmem [#allocation7], %s1864
          %1866 = dma.done %s1862, 128
        $region96: #{tpu_custom_call.1} parent=91 // pred_fallthru
          _
      $region92: #{tpu_custom_call.1} parent=5 // pred_fallthru
        _
    $region6: #{tpu_custom_call.1} parent=1 // loop_footer
      %s33 = sadd.s32 1, %s29
    $region7: #{tpu_custom_call.1} parent=1 // loop_footer_branch
      %28 = sbr.rel target = $region3
    $region8: #{tpu_custom_call.1} parent=1 // loop_exit
      _
    %1867 = vsyncpa [#allocation3], 1
    %s1868 = scalar_lea.sflag [#allocation3], 1
    %1869 = vsyncpa %s1868, 1
    %1870 = vsyncpa [#allocation6], 1
    %s1871 = scalar_lea.sflag [#allocation6], 1
    %1872 = vsyncpa %s1871, 1
    %1873 = vsyncpa [#allocation4], 1
    %s1874 = scalar_lea.sflag [#allocation4], 1
    %1875 = vsyncpa %s1874, 1

</llo_original>
